<compile_context>
chip_gen: v7x
topology: tpu7x:2x2x1
jax: 0.10.0
libtpu: 0.0.40
codegen_flags: <defaults>
</compile_context>

<pallas_src>
import numpy as np
import jax
import jax.numpy as jnp
from jax.experimental import pallas as pl
from jax.experimental.pallas import tpu as pltpu


_VEC_W = 128        # lane-dense width for the width-1 (vector) propagation passes
_MIN_BUCKET = 128   # smallest padded subgraph size (keeps (8,128) tiling happy)
_MAX_TM = 1024      # max row tile for the streamed adjacency matmul
_MAX_TK = 512       # max k tile for the streamed adjacency matmul


def _bucket_size(n):
    """Round the subgraph size up to a power-of-two bucket (>= 128)."""
    return max(_MIN_BUCKET, 1 << max(n - 1, 0).bit_length())


def _pad_up(n, m):
    return ((n + m - 1) // m) * m


# --------------------------------------------------------------------------
# Pallas kernel: one graph-propagation pass
#   out = act(adj @ S + bias) [ @ W  if with_proj ]
#   adj : (n_pad, n_pad) int8/f32, streamed in (tm, tk) tiles (cast to f32)
#   S   : (n_pad, c_s)   f32, VMEM-resident, k-sliced in the kernel
#   bias: (1, c_s)       f32
#   W   : (c_s, c_out)   f32 (optional fused projection in the epilogue)
#   out : (n_pad, c_out) f32 (c_out is lane-dense, >= 128)
# --------------------------------------------------------------------------
def _make_adj_propagate(n_pad, c_s, c_out, tm, tk, act, with_proj):
    n_row_tiles = n_pad // tm
    n_k_tiles = n_pad // tk

    def _body(adj_ref, s_ref, b_ref, o_ref, acc_ref, w_ref):
        k = pl.program_id(1)

        # int8 (or f32) adjacency tile -> f32 operand; VPU cast hidden under DMA.
        a = adj_ref[...].astype(jnp.float32)
        start = pl.multiple_of(k * tk, tk)
        s_k = s_ref[pl.ds(start, tk), :]                    # resident S, k-slice
        part = jnp.dot(a, s_k, preferred_element_type=jnp.float32)

        @pl.when(k == 0)
        def _():
            acc_ref[...] = part                              # no zero-init + add

        @pl.when(k > 0)
        def _():
            acc_ref[...] += part

        @pl.when(k == n_k_tiles - 1)
        def _():
            r = acc_ref[...] + b_ref[...]                    # bias add in f32
            if act == "relu":
                r = jnp.maximum(r, 0.0)
            elif act == "sigmoid":
                r = jax.nn.sigmoid(r)
            if w_ref is not None:                            # fused projection
                r = jnp.dot(r, w_ref[...], preferred_element_type=jnp.float32)
            o_ref[...] = r

    if with_proj:
        def kernel(adj_ref, s_ref, b_ref, w_ref, o_ref, acc_ref):
            _body(adj_ref, s_ref, b_ref, o_ref, acc_ref, w_ref)
        in_specs = [
            pl.BlockSpec((tm, tk), lambda i, k: (i, k)),      # adj tile (streamed)
            pl.BlockSpec((n_pad, c_s), lambda i, k: (0, 0)),  # S (resident)
            pl.BlockSpec((1, c_s), lambda i, k: (0, 0)),      # bias
            pl.BlockSpec((c_s, c_out), lambda i, k: (0, 0)),  # fused projection W
        ]
    else:
        def kernel(adj_ref, s_ref, b_ref, o_ref, acc_ref):
            _body(adj_ref, s_ref, b_ref, o_ref, acc_ref, None)
        in_specs = [
            pl.BlockSpec((tm, tk), lambda i, k: (i, k)),
            pl.BlockSpec((n_pad, c_s), lambda i, k: (0, 0)),
            pl.BlockSpec((1, c_s), lambda i, k: (0, 0)),
        ]

    return pl.pallas_call(
        kernel,
        out_shape=jax.ShapeDtypeStruct((n_pad, c_out), jnp.float32),
        grid_spec=pltpu.PrefetchScalarGridSpec(
            num_scalar_prefetch=0,
            grid=(n_row_tiles, n_k_tiles),
            in_specs=in_specs,
            out_specs=pl.BlockSpec((tm, c_out), lambda i, k: (i, 0)),
            scratch_shapes=[pltpu.VMEM((tm, c_s), jnp.float32)],
        ),
        compiler_params=pltpu.CompilerParams(
            dimension_semantics=("parallel", "arbitrary"),
            # int8 adj tiles + resident S + f32 accumulator/out stay far below
            # 32 MiB for any realistic bucket; safe on v5e/v6e/v7x.
            vmem_limit_bytes=32 * 1024 * 1024,
        ),
    )


# --------------------------------------------------------------------------
# Host-side helpers (graph search is dynamic-shape host logic)
# --------------------------------------------------------------------------
def get_neighbour_nodes(adj_np, active_idx):
    active = set(int(a) for a in active_idx)
    nbrs = set()
    for i in active:
        nbrs.update(np.nonzero(adj_np[i] > 0)[0].tolist())
    nbrs -= active
    return sorted(nbrs)


class GSNNPallas:
    def __init__(self, config, KG_vocab, KG_nodes, n_total_nodes, key):
        self.config = config
        self.KG_vocab = KG_vocab
        self.KG_nodes = KG_nodes
        self.nfeat = config['gcn']['n_feat']
        self.nhid = config['gcn']['n_hid']
        self.nout = config['gcn']['n_out']
        self.n_steps = config['gsnn']['n_steps']
        self.step_threshold = config['gsnn']['step_threshold']
        self.n_nodes = n_total_nodes

        # hidden width padded up to a lane-dense multiple of 128
        self.nh_pad = max(_VEC_W, _pad_up(self.nhid, _VEC_W))

        # Deterministic parameter init (one GCN + Importance_net per step),
        # plus the derived/fused/padded parameters actually fed to the kernels:
        #   w1   : (nfeat, nh_pad)   columns >= nhid are zero
        #   b1   : (1, nh_pad)
        #   w2v  : (nh_pad, 128)     col 0 = W2 @ W_imp, everything else zero
        #   b2v  : (1, 128)          col 0 = b2 @ W_imp
        #   bimp : (1, 128)          col 0 = b_imp
        self.params = []
        for s in range(self.n_steps):
            k = jax.random.fold_in(key, s)
            k1, k2, k3 = jax.random.split(k, 3)
            sc1 = 1.0 / np.sqrt(self.nfeat)
            sc2 = 1.0 / np.sqrt(self.nhid)
            sc3 = 1.0 / np.sqrt(self.nout)
            w1 = jax.random.uniform(k1, (self.nfeat, self.nhid),
                                    jnp.float32, -sc1, sc1)
            w2 = jax.random.uniform(k2, (self.nhid, self.nout),
                                    jnp.float32, -sc2, sc2)
            wimp = jax.random.uniform(k3, (self.nout, 1),
                                      jnp.float32, -sc3, sc3)
            b1 = jnp.zeros((1, self.nhid), jnp.float32)
            b2 = jnp.zeros((1, self.nout), jnp.float32)
            bimp = jnp.zeros((1, 1), jnp.float32)

            w2v = jnp.dot(w2, wimp)                       # (nhid, 1), f32 x f32
            b2v = jnp.dot(b2, wimp)                       # (1, 1)

            w1_pad = jnp.zeros((self.nfeat, self.nh_pad), jnp.float32)
            w1_pad = w1_pad.at[:, :self.nhid].set(w1)
            b1_pad = jnp.zeros((1, self.nh_pad), jnp.float32)
            b1_pad = b1_pad.at[:, :self.nhid].set(b1)
            w2v_pad = jnp.zeros((self.nh_pad, _VEC_W), jnp.float32)
            w2v_pad = w2v_pad.at[:self.nhid, :1].set(w2v)
            b2v_pad = jnp.zeros((1, _VEC_W), jnp.float32).at[:, :1].set(b2v)
            bimp_pad = jnp.zeros((1, _VEC_W), jnp.float32).at[:, :1].set(bimp)

            self.params.append(dict(
                w1=w1_pad, b1=b1_pad, w2v=w2v_pad, b2v=b2v_pad, bimp=bimp_pad,
            ))

        self._step_fns = {}      # bucket size -> jitted step function
        self._x_dev = None
        self._adj_dev = None
        self._adj_np = None

    # ---------------- per-bucket jitted step ----------------
    def _build_step_fn(self, n_pad):
        tk = min(n_pad, _MAX_TK)
        # >=2 row tiles whenever possible so the "parallel" row axis feeds
        # both TensorCores on v7x; still a power of two dividing n_pad.
        tm = min(n_pad // 2, _MAX_TM) if n_pad >= 2 * _MIN_BUCKET else n_pad
        nh_pad = self.nh_pad

        # pass1: s2 = relu(adj @ s1 + b1) @ (W2 @ W_imp)    (fused epilogue)
        # pass2: v   = adj @ s2 + b2@W_imp                  (col 0 = h2 @ W_imp)
        # pass3: imp = sigmoid(adj @ v + b_imp)             (col 0 = importance)
        pass1 = _make_adj_propagate(n_pad, nh_pad, _VEC_W, tm, tk, "relu", True)
        pass2 = _make_adj_propagate(n_pad, _VEC_W, _VEC_W, tm, tk, "none", False)
        pass3 = _make_adj_propagate(n_pad, _VEC_W, _VEC_W, tm, tk, "sigmoid", False)

        def step(x_dev, adj_dev, idx_pad, n_active, n_current,
                 w1, b1, w2v, b2v, bimp):
            # device-side subgraph gather (sentinel index -> zero row/col).
            x_sub = jnp.take(x_dev, idx_pad, axis=0)              # (n_pad, nfeat) f32
            adj_rows = jnp.take(adj_dev, idx_pad, axis=0)
            adj_sub = jnp.take(adj_rows, idx_pad, axis=1)         # (n_pad, n_pad) i8/f32

            # tiny feature projection once (f32 x f32), then the streamed
            # adjacency passes in Pallas.
            s1 = jnp.dot(x_sub, w1, preferred_element_type=jnp.float32)
            s2 = pass1(adj_sub, s1, b1, w2v)       # col0 = h1 @ (W2 @ W_imp)
            v = pass2(adj_sub, s2, b2v)            # col0 = h2 @ W_imp
            imp = pass3(adj_sub, v, bimp)          # col0 = importance

            impc = imp[:, 0:1]                                    # (n_pad, 1) f32

            # on-device decision reductions (masked against padding) so only
            # scalars cross the host boundary per step.
            rows = jax.lax.broadcasted_iota(jnp.int32, (n_pad, 1), 0)
            neg = jnp.float32(-1e30)
            act_mask = rows < n_active
            nbr_mask = jnp.logical_and(rows >= n_active, rows < n_current)
            cur_mask = rows < n_current

            max_act = jnp.max(jnp.where(act_mask, impc, neg))
            nbr_vals = jnp.where(nbr_mask, impc, neg)
            max_nbr = jnp.max(nbr_vals)
            arg_nbr = jnp.argmax(nbr_vals[:, 0]).astype(jnp.int32)  # global row
            l1 = jnp.sum(jnp.where(cur_mask, jnp.abs(impc), 0.0))
            return impc, max_act, max_nbr, arg_nbr, l1

        return jax.jit(step)

    def _get_step_fn(self, n_pad):
        if n_pad not in self._step_fns:
            self._step_fns[n_pad] = self._build_step_fn(n_pad)
        return self._step_fns[n_pad]

    def _run_step(self, current_idx, n_active, step):
        n = len(current_idx)
        n_pad = _bucket_size(n)
        step_fn = self._get_step_fn(n_pad)
        idx_pad = np.full((n_pad,), self.n_nodes, np.int32)   # sentinel = zero row
        if n > 0:
            idx_pad[:n] = np.asarray(current_idx, np.int32)
        p = self.params[step]
        return step_fn(self._x_dev, self._adj_dev, jnp.asarray(idx_pad),
                       np.int32(n_active), np.int32(n),
                       p['w1'], p['b1'], p['w2v'], p['b2v'], p['bimp'])

    # ---------------- forward (graph search) ----------------
    def forward(self, x, adj, active_idx_init):
        x_np = np.asarray(x, dtype=np.float32)
        adj_np = np.asarray(adj, dtype=np.float32)
        N = adj_np.shape[0]
        self.n_nodes = N
        self._adj_np = adj_np

        # device-resident padded copies (single upload per forward);
        # row/col N is the all-zero padding sentinel.  The adjacency is kept
        # as int8 when it is binary (exact), halving HBM traffic; otherwise it
        # falls back to f32.
        x_pad = np.zeros((N + 1, self.nfeat), np.float32)
        x_pad[:N] = x_np
        is_binary = bool(np.all((adj_np == 0.0) | (adj_np == 1.0)))
        adj_store_dtype = np.int8 if is_binary else np.float32
        a_pad = np.zeros((N + 1, N + 1), adj_store_dtype)
        a_pad[:N, :N] = adj_np.astype(adj_store_dtype)
        self._x_dev = jnp.asarray(x_pad)
        self._adj_dev = jnp.asarray(a_pad)

        active = [int(a) for a in np.asarray(active_idx_init)]
        objects = set(self.KG_nodes['objects'][0])

        # Expansion steps: only object nodes are candidates.
        for step in range(self.n_steps - 1):
            nbrs = get_neighbour_nodes(adj_np, active)
            nbrs = [n for n in nbrs if self.KG_vocab[n] in objects]
            if len(nbrs) == 0:
                # original code's try/except-continue path for empty expansion
                continue
            current = active + nbrs
            _, max_act, max_nbr, arg_nbr, _ = self._run_step(current,
                                                             len(active), step)
            if self.step_threshold * float(max_act) > float(max_nbr):
                break
            best_rel = int(arg_nbr) - len(active)
            active = active + [nbrs[best_rel]]

        # Final step: only non-object neighbours, L1-normalized importance.
        nbrs = get_neighbour_nodes(adj_np, active)
        nbrs = [n for n in nbrs if self.KG_vocab[n] not in objects]
        current = active + nbrs
        imp, _, _, _, l1 = self._run_step(current, len(active),
                                          self.n_steps - 1)
        imp_np = np.asarray(imp)[:len(current), 0]
        denom = max(float(l1), 1e-12)                  # F.normalize(p=1, dim=0)
        out_imp = jnp.asarray(imp_np[len(active):] / denom)
        out_idx = jnp.asarray(np.asarray(current[len(active):], dtype=np.int32))
        return out_imp, out_idx


# --------------------------------------------------------------------------
# Demo
# --------------------------------------------------------------------------
if __name__ == "__main__":
    key = jax.random.PRNGKey(0)

    N_NODES = 12
    config = {
        'gcn': {'n_feat': 16, 'n_hid': 32, 'n_out': 16,
                'dropout': 0.5, 'n_layers': 2},
        'gsnn': {'n_steps': 3, 'step_threshold': 0.5},
    }

    # Synthetic knowledge graph.
    KG_vocab = [f"node_{i}" for i in range(N_NODES)]
    # First 8 nodes are "objects", last 4 are attributes/relations.
    KG_nodes = {'objects': [set(f"node_{i}" for i in range(8))]}

    kx, ka, kp = jax.random.split(key, 3)
    x = jax.random.normal(kx, (N_NODES, config['gcn']['n_feat']), jnp.float32)

    # Deterministic symmetric 0/1 adjacency with self loops.
    a = jax.random.uniform(ka, (N_NODES, N_NODES))
    adj = (a + a.T > 1.0).astype(jnp.float32)
    adj = jnp.maximum(adj, jnp.eye(N_NODES, dtype=jnp.float32))

    active_idx_init = jnp.array([0, 1], dtype=jnp.int32)

    model = GSNNPallas(config, KG_vocab, KG_nodes, N_NODES, kp)
    imp_out, idx_out = model.forward(x, adj, active_idx_init)
    jax.block_until_ready(imp_out)
    jax.block_until_ready(idx_out)
    print("KERNEL_OK")
</pallas_src>

<mosaic_0001>
module attributes {stable_mosaic.version = 11 : i64} {
  func.func @kernel(%arg0: i32, %arg1: i32, %arg2: memref<128x128xi8, #tpu.memory_space<vmem>>, %arg3: memref<128x128xf32, #tpu.memory_space<vmem>>, %arg4: memref<1x128xf32, #tpu.memory_space<vmem>>, %arg5: memref<128x128xf32, #tpu.memory_space<vmem>>, %arg6: memref<128x128xf32, #tpu.memory_space<vmem>>, %arg7: memref<128x128xf32, #tpu.memory_space<vmem>>) attributes {dimension_semantics = [#tpu.dimension_semantics<parallel>, #tpu.dimension_semantics<arbitrary>], iteration_bounds = array<i64: 1, 1>, scalar_prefetch = 0 : i64, scratch_operands = 1 : i64, tpu.core_type = #tpu.core_type<tc>, window_params = [{transform_indices = @transform_0, window_bounds = array<i64: 128, 128>}, {pipeline_mode = #tpu.pipeline_mode<synchronous>, transform_indices = @transform_1, window_bounds = array<i64: 128, 128>}, {pipeline_mode = #tpu.pipeline_mode<synchronous>, transform_indices = @transform_2, window_bounds = array<i64: 1, 128>}, {pipeline_mode = #tpu.pipeline_mode<synchronous>, transform_indices = @transform_3, window_bounds = array<i64: 128, 128>}, {transform_indices = @transform_4, window_bounds = array<i64: 128, 128>}]} {
    %c0 = arith.constant 0 : index
    %c0_0 = arith.constant 0 : index
    %0 = vector.load %arg2[%c0, %c0_0] : memref<128x128xi8, #tpu.memory_space<vmem>>, vector<128x128xi8>
    %1 = arith.sitofp %0 : vector<128x128xi8> to vector<128x128xf32>
    %c128_i32 = arith.constant 128 : i32
    %2 = arith.muli %arg1, %c128_i32 : i32
    %3 = tpu.assume_multiple %2, 128 : i32
    %4 = arith.index_cast %3 : i32 to index
    %c0_1 = arith.constant 0 : index
    %5 = vector.load %arg3[%4, %c0_1] : memref<128x128xf32, #tpu.memory_space<vmem>>, vector<128x128xf32>
    %cst = arith.constant dense<0.000000e+00> : vector<128x128xf32>
    %6 = tpu.matmul %1, %5, %cst {dimension_numbers = #tpu.dot_dimension_numbers<[1], [0], [0], [1], [0, 0, 1, 1], [], []>} : vector<128x128xf32>, vector<128x128xf32>, vector<128x128xf32> -> vector<128x128xf32>
    %c0_i32 = arith.constant 0 : i32
    %7 = arith.cmpi eq, %arg1, %c0_i32 : i32
    %8 = arith.extui %7 : i1 to i32
    %c0_i32_2 = arith.constant 0 : i32
    %9 = arith.cmpi ne, %8, %c0_i32_2 : i32
    scf.if %9 {
      %c0_7 = arith.constant 0 : index
      %c0_8 = arith.constant 0 : index
      %16 = vector.load %arg7[%c0_7, %c0_8] : memref<128x128xf32, #tpu.memory_space<vmem>>, vector<128x128xf32>
      tpu.vector_store %arg7[%c0_7, %c0_8], %6 {strides = array<i32>} : memref<128x128xf32, #tpu.memory_space<vmem>>, vector<128x128xf32>,
    } else {
    }
    %c0_i32_3 = arith.constant 0 : i32
    %10 = arith.cmpi sgt, %arg1, %c0_i32_3 : i32
    %11 = arith.extui %10 : i1 to i32
    %c0_i32_4 = arith.constant 0 : i32
    %12 = arith.cmpi ne, %11, %c0_i32_4 : i32
    scf.if %12 {
      %c0_7 = arith.constant 0 : index
      %c0_8 = arith.constant 0 : index
      %16 = vector.load %arg7[%c0_7, %c0_8] : memref<128x128xf32, #tpu.memory_space<vmem>>, vector<128x128xf32>
      %17 = arith.addf %16, %6 : vector<128x128xf32>
      %c0_9 = arith.constant 0 : index
      %c0_10 = arith.constant 0 : index
      %18 = vector.load %arg7[%c0_9, %c0_10] : memref<128x128xf32, #tpu.memory_space<vmem>>, vector<128x128xf32>
      tpu.vector_store %arg7[%c0_9, %c0_10], %17 {strides = array<i32>} : memref<128x128xf32, #tpu.memory_space<vmem>>, vector<128x128xf32>,
    } else {
    }
    %c0_i32_5 = arith.constant 0 : i32
    %13 = arith.cmpi eq, %arg1, %c0_i32_5 : i32
    %14 = arith.extui %13 : i1 to i32
    %c0_i32_6 = arith.constant 0 : i32
    %15 = arith.cmpi ne, %14, %c0_i32_6 : i32
    scf.if %15 {
      %c0_7 = arith.constant 0 : index
      %c0_8 = arith.constant 0 : index
      %16 = vector.load %arg7[%c0_7, %c0_8] : memref<128x128xf32, #tpu.memory_space<vmem>>, vector<128x128xf32>
      %c0_9 = arith.constant 0 : index
      %c0_10 = arith.constant 0 : index
      %17 = vector.load %arg4[%c0_9, %c0_10] : memref<1x128xf32, #tpu.memory_space<vmem>>, vector<1x128xf32>
      %18 = vector.broadcast %17 : vector<1x128xf32> to vector<128x128xf32>
      %19 = arith.addf %16, %18 : vector<128x128xf32>
      %cst_11 = arith.constant 0.000000e+00 : f32
      %20 = vector.broadcast %cst_11 : f32 to vector<128x128xf32>
      %21 = arith.maximumf %19, %20 : vector<128x128xf32>
      %c0_12 = arith.constant 0 : index
      %c0_13 = arith.constant 0 : index
      %22 = vector.load %arg5[%c0_12, %c0_13] : memref<128x128xf32, #tpu.memory_space<vmem>>, vector<128x128xf32>
      %cst_14 = arith.constant dense<0.000000e+00> : vector<128x128xf32>
      %23 = tpu.matmul %21, %22, %cst_14 {dimension_numbers = #tpu.dot_dimension_numbers<[1], [0], [0], [1], [0, 0, 1, 1], [], []>} : vector<128x128xf32>, vector<128x128xf32>, vector<128x128xf32> -> vector<128x128xf32>
      %c0_15 = arith.constant 0 : index
      %c0_16 = arith.constant 0 : index
      %24 = vector.load %arg6[%c0_15, %c0_16] : memref<128x128xf32, #tpu.memory_space<vmem>>, vector<128x128xf32>
      tpu.vector_store %arg6[%c0_15, %c0_16], %23 {strides = array<i32>} : memref<128x128xf32, #tpu.memory_space<vmem>>, vector<128x128xf32>,
    } else {
    }
    return
  }
  func.func @transform_0(%arg0: i32, %arg1: i32) -> (i32, i32) {
    %c0_i32 = arith.constant 0 : i32
    return %arg0, %arg1 : i32, i32
  }
  func.func @transform_1(%arg0: i32, %arg1: i32) -> (i32, i32) {
    %c0_i32 = arith.constant 0 : i32
    %c0_i32_0 = arith.constant 0 : i32
    %c0_i32_1 = arith.constant 0 : i32
    return %c0_i32, %c0_i32_0 : i32, i32
  }
  func.func @transform_2(%arg0: i32, %arg1: i32) -> (i32, i32) {
    %c0_i32 = arith.constant 0 : i32
    %c0_i32_0 = arith.constant 0 : i32
    %c0_i32_1 = arith.constant 0 : i32
    return %c0_i32, %c0_i32_0 : i32, i32
  }
  func.func @transform_3(%arg0: i32, %arg1: i32) -> (i32, i32) {
    %c0_i32 = arith.constant 0 : i32
    %c0_i32_0 = arith.constant 0 : i32
    %c0_i32_1 = arith.constant 0 : i32
    return %c0_i32, %c0_i32_0 : i32, i32
  }
  func.func @transform_4(%arg0: i32, %arg1: i32) -> (i32, i32) {
    %c0_i32 = arith.constant 0 : i32
    %c0_i32_0 = arith.constant 0 : i32
    return %arg0, %c0_i32 : i32, i32
  }
}

module attributes {stable_mosaic.version = 11 : i64} {
  func.func @kernel(%arg0: i32, %arg1: i32, %arg2: memref<128x128xi8, #tpu.memory_space<vmem>>, %arg3: memref<128x128xf32, #tpu.memory_space<vmem>>, %arg4: memref<1x128xf32, #tpu.memory_space<vmem>>, %arg5: memref<128x128xf32, #tpu.memory_space<vmem>>, %arg6: memref<128x128xf32, #tpu.memory_space<vmem>>) attributes {dimension_semantics = [#tpu.dimension_semantics<parallel>, #tpu.dimension_semantics<arbitrary>], iteration_bounds = array<i64: 1, 1>, scalar_prefetch = 0 : i64, scratch_operands = 1 : i64, tpu.core_type = #tpu.core_type<tc>, window_params = [{transform_indices = @transform_0, window_bounds = array<i64: 128, 128>}, {pipeline_mode = #tpu.pipeline_mode<synchronous>, transform_indices = @transform_1, window_bounds = array<i64: 128, 128>}, {pipeline_mode = #tpu.pipeline_mode<synchronous>, transform_indices = @transform_2, window_bounds = array<i64: 1, 128>}, {transform_indices = @transform_3, window_bounds = array<i64: 128, 128>}]} {
    %c0 = arith.constant 0 : index
    %c0_0 = arith.constant 0 : index
    %0 = vector.load %arg2[%c0, %c0_0] : memref<128x128xi8, #tpu.memory_space<vmem>>, vector<128x128xi8>
    %1 = arith.sitofp %0 : vector<128x128xi8> to vector<128x128xf32>
    %c128_i32 = arith.constant 128 : i32
    %2 = arith.muli %arg1, %c128_i32 : i32
    %3 = tpu.assume_multiple %2, 128 : i32
    %4 = arith.index_cast %3 : i32 to index
    %c0_1 = arith.constant 0 : index
    %5 = vector.load %arg3[%4, %c0_1] : memref<128x128xf32, #tpu.memory_space<vmem>>, vector<128x128xf32>
    %cst = arith.constant dense<0.000000e+00> : vector<128x128xf32>
    %6 = tpu.matmul %1, %5, %cst {dimension_numbers = #tpu.dot_dimension_numbers<[1], [0], [0], [1], [0, 0, 1, 1], [], []>} : vector<128x128xf32>, vector<128x128xf32>, vector<128x128xf32> -> vector<128x128xf32>
    %c0_i32 = arith.constant 0 : i32
    %7 = arith.cmpi eq, %arg1, %c0_i32 : i32
    %8 = arith.extui %7 : i1 to i32
    %c0_i32_2 = arith.constant 0 : i32
    %9 = arith.cmpi ne, %8, %c0_i32_2 : i32
    scf.if %9 {
      %c0_7 = arith.constant 0 : index
      %c0_8 = arith.constant 0 : index
      %16 = vector.load %arg6[%c0_7, %c0_8] : memref<128x128xf32, #tpu.memory_space<vmem>>, vector<128x128xf32>
      tpu.vector_store %arg6[%c0_7, %c0_8], %6 {strides = array<i32>} : memref<128x128xf32, #tpu.memory_space<vmem>>, vector<128x128xf32>,
    } else {
    }
    %c0_i32_3 = arith.constant 0 : i32
    %10 = arith.cmpi sgt, %arg1, %c0_i32_3 : i32
    %11 = arith.extui %10 : i1 to i32
    %c0_i32_4 = arith.constant 0 : i32
    %12 = arith.cmpi ne, %11, %c0_i32_4 : i32
    scf.if %12 {
      %c0_7 = arith.constant 0 : index
      %c0_8 = arith.constant 0 : index
      %16 = vector.load %arg6[%c0_7, %c0_8] : memref<128x128xf32, #tpu.memory_space<vmem>>, vector<128x128xf32>
      %17 = arith.addf %16, %6 : vector<128x128xf32>
      %c0_9 = arith.constant 0 : index
      %c0_10 = arith.constant 0 : index
      %18 = vector.load %arg6[%c0_9, %c0_10] : memref<128x128xf32, #tpu.memory_space<vmem>>, vector<128x128xf32>
      tpu.vector_store %arg6[%c0_9, %c0_10], %17 {strides = array<i32>} : memref<128x128xf32, #tpu.memory_space<vmem>>, vector<128x128xf32>,
    } else {
    }
    %c0_i32_5 = arith.constant 0 : i32
    %13 = arith.cmpi eq, %arg1, %c0_i32_5 : i32
    %14 = arith.extui %13 : i1 to i32
    %c0_i32_6 = arith.constant 0 : i32
    %15 = arith.cmpi ne, %14, %c0_i32_6 : i32
    scf.if %15 {
      %c0_7 = arith.constant 0 : index
      %c0_8 = arith.constant 0 : index
      %16 = vector.load %arg6[%c0_7, %c0_8] : memref<128x128xf32, #tpu.memory_space<vmem>>, vector<128x128xf32>
      %c0_9 = arith.constant 0 : index
      %c0_10 = arith.constant 0 : index
      %17 = vector.load %arg4[%c0_9, %c0_10] : memref<1x128xf32, #tpu.memory_space<vmem>>, vector<1x128xf32>
      %18 = vector.broadcast %17 : vector<1x128xf32> to vector<128x128xf32>
      %19 = arith.addf %16, %18 : vector<128x128xf32>
      %c0_11 = arith.constant 0 : index
      %c0_12 = arith.constant 0 : index
      %20 = vector.load %arg5[%c0_11, %c0_12] : memref<128x128xf32, #tpu.memory_space<vmem>>, vector<128x128xf32>
      tpu.vector_store %arg5[%c0_11, %c0_12], %19 {strides = array<i32>} : memref<128x128xf32, #tpu.memory_space<vmem>>, vector<128x128xf32>,
    } else {
    }
    return
  }
  func.func @transform_0(%arg0: i32, %arg1: i32) -> (i32, i32) {
    %c0_i32 = arith.constant 0 : i32
    return %arg0, %arg1 : i32, i32
  }
  func.func @transform_1(%arg0: i32, %arg1: i32) -> (i32, i32) {
    %c0_i32 = arith.constant 0 : i32
    %c0_i32_0 = arith.constant 0 : i32
    %c0_i32_1 = arith.constant 0 : i32
    return %c0_i32, %c0_i32_0 : i32, i32
  }
  func.func @transform_2(%arg0: i32, %arg1: i32) -> (i32, i32) {
    %c0_i32 = arith.constant 0 : i32
    %c0_i32_0 = arith.constant 0 : i32
    %c0_i32_1 = arith.constant 0 : i32
    return %c0_i32, %c0_i32_0 : i32, i32
  }
  func.func @transform_3(%arg0: i32, %arg1: i32) -> (i32, i32) {
    %c0_i32 = arith.constant 0 : i32
    %c0_i32_0 = arith.constant 0 : i32
    return %arg0, %c0_i32 : i32, i32
  }
}

module attributes {stable_mosaic.version = 11 : i64} {
  func.func @kernel(%arg0: i32, %arg1: i32, %arg2: memref<128x128xi8, #tpu.memory_space<vmem>>, %arg3: memref<128x128xf32, #tpu.memory_space<vmem>>, %arg4: memref<1x128xf32, #tpu.memory_space<vmem>>, %arg5: memref<128x128xf32, #tpu.memory_space<vmem>>, %arg6: memref<128x128xf32, #tpu.memory_space<vmem>>) attributes {dimension_semantics = [#tpu.dimension_semantics<parallel>, #tpu.dimension_semantics<arbitrary>], iteration_bounds = array<i64: 1, 1>, scalar_prefetch = 0 : i64, scratch_operands = 1 : i64, tpu.core_type = #tpu.core_type<tc>, window_params = [{transform_indices = @transform_0, window_bounds = array<i64: 128, 128>}, {pipeline_mode = #tpu.pipeline_mode<synchronous>, transform_indices = @transform_1, window_bounds = array<i64: 128, 128>}, {pipeline_mode = #tpu.pipeline_mode<synchronous>, transform_indices = @transform_2, window_bounds = array<i64: 1, 128>}, {transform_indices = @transform_3, window_bounds = array<i64: 128, 128>}]} {
    %c0 = arith.constant 0 : index
    %c0_0 = arith.constant 0 : index
    %0 = vector.load %arg2[%c0, %c0_0] : memref<128x128xi8, #tpu.memory_space<vmem>>, vector<128x128xi8>
    %1 = arith.sitofp %0 : vector<128x128xi8> to vector<128x128xf32>
    %c128_i32 = arith.constant 128 : i32
    %2 = arith.muli %arg1, %c128_i32 : i32
    %3 = tpu.assume_multiple %2, 128 : i32
    %4 = arith.index_cast %3 : i32 to index
    %c0_1 = arith.constant 0 : index
    %5 = vector.load %arg3[%4, %c0_1] : memref<128x128xf32, #tpu.memory_space<vmem>>, vector<128x128xf32>
    %cst = arith.constant dense<0.000000e+00> : vector<128x128xf32>
    %6 = tpu.matmul %1, %5, %cst {dimension_numbers = #tpu.dot_dimension_numbers<[1], [0], [0], [1], [0, 0, 1, 1], [], []>} : vector<128x128xf32>, vector<128x128xf32>, vector<128x128xf32> -> vector<128x128xf32>
    %c0_i32 = arith.constant 0 : i32
    %7 = arith.cmpi eq, %arg1, %c0_i32 : i32
    %8 = arith.extui %7 : i1 to i32
    %c0_i32_2 = arith.constant 0 : i32
    %9 = arith.cmpi ne, %8, %c0_i32_2 : i32
    scf.if %9 {
      %c0_7 = arith.constant 0 : index
      %c0_8 = arith.constant 0 : index
      %16 = vector.load %arg6[%c0_7, %c0_8] : memref<128x128xf32, #tpu.memory_space<vmem>>, vector<128x128xf32>
      tpu.vector_store %arg6[%c0_7, %c0_8], %6 {strides = array<i32>} : memref<128x128xf32, #tpu.memory_space<vmem>>, vector<128x128xf32>,
    } else {
    }
    %c0_i32_3 = arith.constant 0 : i32
    %10 = arith.cmpi sgt, %arg1, %c0_i32_3 : i32
    %11 = arith.extui %10 : i1 to i32
    %c0_i32_4 = arith.constant 0 : i32
    %12 = arith.cmpi ne, %11, %c0_i32_4 : i32
    scf.if %12 {
      %c0_7 = arith.constant 0 : index
      %c0_8 = arith.constant 0 : index
      %16 = vector.load %arg6[%c0_7, %c0_8] : memref<128x128xf32, #tpu.memory_space<vmem>>, vector<128x128xf32>
      %17 = arith.addf %16, %6 : vector<128x128xf32>
      %c0_9 = arith.constant 0 : index
      %c0_10 = arith.constant 0 : index
      %18 = vector.load %arg6[%c0_9, %c0_10] : memref<128x128xf32, #tpu.memory_space<vmem>>, vector<128x128xf32>
      tpu.vector_store %arg6[%c0_9, %c0_10], %17 {strides = array<i32>} : memref<128x128xf32, #tpu.memory_space<vmem>>, vector<128x128xf32>,
    } else {
    }
    %c0_i32_5 = arith.constant 0 : i32
    %13 = arith.cmpi eq, %arg1, %c0_i32_5 : i32
    %14 = arith.extui %13 : i1 to i32
    %c0_i32_6 = arith.constant 0 : i32
    %15 = arith.cmpi ne, %14, %c0_i32_6 : i32
    scf.if %15 {
      %c0_7 = arith.constant 0 : index
      %c0_8 = arith.constant 0 : index
      %16 = vector.load %arg6[%c0_7, %c0_8] : memref<128x128xf32, #tpu.memory_space<vmem>>, vector<128x128xf32>
      %c0_9 = arith.constant 0 : index
      %c0_10 = arith.constant 0 : index
      %17 = vector.load %arg4[%c0_9, %c0_10] : memref<1x128xf32, #tpu.memory_space<vmem>>, vector<1x128xf32>
      %18 = vector.broadcast %17 : vector<1x128xf32> to vector<128x128xf32>
      %19 = arith.addf %16, %18 : vector<128x128xf32>
      %20 = arith.negf %19 : vector<128x128xf32>
      %21 = math.exp %20 : vector<128x128xf32>
      %cst_11 = arith.constant 1.000000e+00 : f32
      %22 = vector.broadcast %cst_11 : f32 to vector<128x128xf32>
      %23 = arith.addf %22, %21 : vector<128x128xf32>
      %24 = arith.divf %22, %23 : vector<128x128xf32>
      %c0_12 = arith.constant 0 : index
      %c0_13 = arith.constant 0 : index
      %25 = vector.load %arg5[%c0_12, %c0_13] : memref<128x128xf32, #tpu.memory_space<vmem>>, vector<128x128xf32>
      tpu.vector_store %arg5[%c0_12, %c0_13], %24 {strides = array<i32>} : memref<128x128xf32, #tpu.memory_space<vmem>>, vector<128x128xf32>,
    } else {
    }
    return
  }
  func.func @transform_0(%arg0: i32, %arg1: i32) -> (i32, i32) {
    %c0_i32 = arith.constant 0 : i32
    return %arg0, %arg1 : i32, i32
  }
  func.func @transform_1(%arg0: i32, %arg1: i32) -> (i32, i32) {
    %c0_i32 = arith.constant 0 : i32
    %c0_i32_0 = arith.constant 0 : i32
    %c0_i32_1 = arith.constant 0 : i32
    return %c0_i32, %c0_i32_0 : i32, i32
  }
  func.func @transform_2(%arg0: i32, %arg1: i32) -> (i32, i32) {
    %c0_i32 = arith.constant 0 : i32
    %c0_i32_0 = arith.constant 0 : i32
    %c0_i32_1 = arith.constant 0 : i32
    return %c0_i32, %c0_i32_0 : i32, i32
  }
  func.func @transform_3(%arg0: i32, %arg1: i32) -> (i32, i32) {
    %c0_i32 = arith.constant 0 : i32
    %c0_i32_0 = arith.constant 0 : i32
    return %arg0, %c0_i32 : i32, i32
  }
}

</mosaic_0001>

<llo_original>
// kernel: step.4
$region0: #{step.4}
  #allocation0 [shape = 'u32[]', space=smem, size = 0x4, offset = 0x4, fixed_abs, tag = 'smem constant byte address 0x4 - core index']
  #allocation1 [shape = 'u32[144,128]{1,0:T(1,128)}', space=vmem, size = 0x12000, scoped, tag = 'internal scratch']
  #allocation2 [shape = 'f32[128,128]{1,0:T(8,128)}', space=vmem, size = 0x10000, scoped, tag = 'scratch operand']
  %s0 = inlined_call_operand.vmem [shape: s8[128,128], index: 0, kind: input, shape index: {}]
  %s1 = inlined_call_operand.vmem [shape: f32[128,128], index: 1, kind: input, shape index: {}]
  %s2 = inlined_call_operand.vmem [shape: f32[1,128], index: 2, kind: input, shape index: {}]
  %s3 = inlined_call_operand.vmem [shape: f32[128,128], index: 3, kind: output, shape index: {}]
  %s4 = sld [smem:[#allocation0]]
  $region34: #{step.4} parent=0
    _
  %s6 = ssub.s32 1, %s4
  %s7 = scalar_select 0, %s6, %s4
  // Predicated region
  $region2: #{step.4} parent=0 // pred_check
    _
  $region3: #{step.4} parent=0 // pred_check_branch
    %9 = sbr.rel (0) target = $region5
  $region4: #{step.4} parent=0 // pred_region
    _
  $region5: #{step.4} parent=0 // pred_fallthru
    _
  // Predicated region
  $region6: #{step.4} parent=0 // pred_check
    _
  $region7: #{step.4} parent=0 // pred_check_branch
    %11 = sbr.rel (0) target = $region9
  $region8: #{step.4} parent=0 // pred_region
    _
  $region9: #{step.4} parent=0 // pred_fallthru
    _
  // Predicated region
  $region10: #{step.4} parent=0 // pred_check
    _
  $region11: #{step.4} parent=0 // pred_check_branch
    %13 = sbr.rel (0) target = $region13
  $region12: #{step.4} parent=0 // pred_region
    _
  $region13: #{step.4} parent=0 // pred_fallthru
    _
  %v14 = vld [vmem:[%s0] sm:$0xff]
  %v15 = vld [vmem:[%s0 + $0x8] sm:$0xff]
  %v16 = vld [vmem:[%s0 + $0x10] sm:$0xff]
  %v17 = vld [vmem:[%s0 + $0x18] sm:$0xff]
  %v18 = vunpack.c.0.s8 %v14
  %v19 = vunpack.c.1.s8 %v14
  %v20 = vunpack.c.2.s8 %v14
  %v21 = vunpack.c.3.s8 %v14
  %v22 = vunpack.c.0.s8 %v15
  %v23 = vunpack.c.1.s8 %v15
  %v24 = vunpack.c.2.s8 %v15
  %v25 = vunpack.c.3.s8 %v15
  %v26 = vunpack.c.0.s8 %v16
  %v27 = vunpack.c.1.s8 %v16
  %v28 = vunpack.c.2.s8 %v16
  %v29 = vunpack.c.3.s8 %v16
  %v30 = vunpack.c.0.s8 %v17
  %v31 = vunpack.c.1.s8 %v17
  %v32 = vunpack.c.2.s8 %v17
  %v33 = vunpack.c.3.s8 %v17
  %v34 = vcvt.s32.f32 %v18
  %v35 = vcvt.s32.f32 %v19
  %v36 = vcvt.s32.f32 %v20
  %v37 = vcvt.s32.f32 %v21
  %v38 = vcvt.s32.f32 %v22
  %v39 = vcvt.s32.f32 %v23
  %v40 = vcvt.s32.f32 %v24
  %v41 = vcvt.s32.f32 %v25
  %v42 = vcvt.s32.f32 %v26
  %v43 = vcvt.s32.f32 %v27
  %v44 = vcvt.s32.f32 %v28
  %v45 = vcvt.s32.f32 %v29
  %v46 = vcvt.s32.f32 %v30
  %v47 = vcvt.s32.f32 %v31
  %v48 = vcvt.s32.f32 %v32
  %v49 = vcvt.s32.f32 %v33
  %s50 = smul.u32 0, 128
  %s51 = scalar_lea.vmem %s1, %s50
  %v52 = vld [vmem:[%s51] sm:$0xff]
  %v53 = vld [vmem:[%s51 + $0x8] sm:$0xff]
  %v54 = vld [vmem:[%s51 + $0x10] sm:$0xff]
  %v55 = vld [vmem:[%s51 + $0x18] sm:$0xff]
  %v56 = vld [vmem:[%s51 + $0x20] sm:$0xff]
  %v57 = vld [vmem:[%s51 + $0x28] sm:$0xff]
  %v58 = vld [vmem:[%s51 + $0x30] sm:$0xff]
  %v59 = vld [vmem:[%s51 + $0x38] sm:$0xff]
  %v60 = vld [vmem:[%s51 + $0x40] sm:$0xff]
  %v61 = vld [vmem:[%s51 + $0x48] sm:$0xff]
  %v62 = vld [vmem:[%s51 + $0x50] sm:$0xff]
  %v63 = vld [vmem:[%s51 + $0x58] sm:$0xff]
  %v64 = vld [vmem:[%s51 + $0x60] sm:$0xff]
  %v65 = vld [vmem:[%s51 + $0x68] sm:$0xff]
  %v66 = vld [vmem:[%s51 + $0x70] sm:$0xff]
  %v67 = vld [vmem:[%s51 + $0x78] sm:$0xff]
  %68 = vmatprep.subr.mxu0 0.0
  %69 = vmatpush1.msra.mxu0 %v52
  %70 = vmatprep.subr.mxu0 0.0
  %71 = vmatpush1.msra.mxu0 %v53
  %72 = vmatprep.subr.mxu0 0.0
  %73 = vmatpush1.msra.mxu0 %v54
  %74 = vmatprep.subr.mxu0 0.0
  %75 = vmatpush1.msra.mxu0 %v55
  %76 = vmatprep.subr.mxu0 0.0
  %77 = vmatpush1.msra.mxu0 %v56
  %78 = vmatprep.subr.mxu0 0.0
  %79 = vmatpush1.msra.mxu0 %v57
  %80 = vmatprep.subr.mxu0 0.0
  %81 = vmatpush1.msra.mxu0 %v58
  %82 = vmatprep.subr.mxu0 0.0
  %83 = vmatpush1.msra.mxu0 %v59
  %84 = vmatprep.subr.mxu0 0.0
  %85 = vmatpush1.msra.mxu0 %v60
  %86 = vmatprep.subr.mxu0 0.0
  %87 = vmatpush1.msra.mxu0 %v61
  %88 = vmatprep.subr.mxu0 0.0
  %89 = vmatpush1.msra.mxu0 %v62
  %90 = vmatprep.subr.mxu0 0.0
  %91 = vmatpush1.msra.mxu0 %v63
  %92 = vmatprep.subr.mxu0 0.0
  %93 = vmatpush1.msra.mxu0 %v64
  %94 = vmatprep.subr.mxu0 0.0
  %95 = vmatpush1.msra.mxu0 %v65
  %96 = vmatprep.subr.mxu0 0.0
  %97 = vmatpush1.msra.mxu0 %v66
  %98 = vmatprep.subr.mxu0 0.0
  %99 = vmatpush1.msra.mxu0 %v67
  %100 = vmatprep.subr.mxu0 0.0
  %101 = vmatpush1.msra.mxu0 0.0
  %102 = vmatprep.subr.mxu0 0.0
  %103 = vmatpush1.msra.mxu0 0.0
  %104 = vmatprep.subr.mxu0 0.0
  %105 = vmatpush1.msra.mxu0 0.0
  %106 = vmatprep.subr.mxu0 0.0
  %107 = vmatpush1.msra.mxu0 0.0
  %108 = vmatprep.subr.mxu0 0.0
  %109 = vmatpush1.msra.mxu0 0.0
  %110 = vmatprep.subr.mxu0 0.0
  %111 = vmatpush1.msra.mxu0 0.0
  %112 = vmatprep.subr.mxu0 0.0
  %113 = vmatpush1.msra.mxu0 0.0
  %114 = vmatprep.subr.mxu0 0.0
  %115 = vmatpush1.msra.mxu0 0.0
  %116 = vmatprep.subr.mxu0 0.0
  %117 = vmatpush1.msra.mxu0 0.0
  %118 = vmatprep.subr.mxu0 0.0
  %119 = vmatpush1.msra.mxu0 0.0
  %120 = vmatprep.subr.mxu0 0.0
  %121 = vmatpush1.msra.mxu0 0.0
  %122 = vmatprep.subr.mxu0 0.0
  %123 = vmatpush1.msra.mxu0 0.0
  %124 = vmatprep.subr.mxu0 0.0
  %125 = vmatpush1.msra.mxu0 0.0
  %126 = vmatprep.subr.mxu0 0.0
  %127 = vmatpush1.msra.mxu0 0.0
  %128 = vmatprep.subr.mxu0 0.0
  %129 = vmatpush1.msra.mxu0 0.0
  %130 = vmatprep.subr.mxu0 0.0
  %131 = vmatpush1.msra.mxu0 0.0
  %132 = vmatprep.mubr.f32.mxu0 0.0
  %133 = vmatmul.mubr.f32.gmra.mrb[0].mxu0 %v34
  %v134 = vpop.f32.mrb[0].mxu0
  %v135 = vadd.f32 0.0, %v134
  %v136 = vpop.f32.mrb[0].mxu0
  %137 = vmatprep.mubr.f32.mxu0 0.0
  %138 = vmatmul.mubr.f32.gmra.mrb[0].mxu0 %v35
  %v139 = vpop.f32.mrb[0].mxu0
  %v140 = vadd.f32 0.0, %v139
  %v141 = vpop.f32.mrb[0].mxu0
  %142 = vmatprep.mubr.f32.mxu0 0.0
  %143 = vmatmul.mubr.f32.gmra.mrb[0].mxu0 %v36
  %v144 = vpop.f32.mrb[0].mxu0
  %v145 = vadd.f32 0.0, %v144
  %v146 = vpop.f32.mrb[0].mxu0
  %147 = vmatprep.mubr.f32.mxu0 0.0
  %148 = vmatmul.mubr.f32.gmra.mrb[0].mxu0 %v37
  %v149 = vpop.f32.mrb[0].mxu0
  %v150 = vadd.f32 0.0, %v149
  %v151 = vpop.f32.mrb[0].mxu0
  %152 = vmatprep.mubr.f32.mxu0 0.0
  %153 = vmatmul.mubr.f32.gmra.mrb[0].mxu0 %v38
  %v154 = vpop.f32.mrb[0].mxu0
  %v155 = vadd.f32 0.0, %v154
  %v156 = vpop.f32.mrb[0].mxu0
  %157 = vmatprep.mubr.f32.mxu0 0.0
  %158 = vmatmul.mubr.f32.gmra.mrb[0].mxu0 %v39
  %v159 = vpop.f32.mrb[0].mxu0
  %v160 = vadd.f32 0.0, %v159
  %v161 = vpop.f32.mrb[0].mxu0
  %162 = vmatprep.mubr.f32.mxu0 0.0
  %163 = vmatmul.mubr.f32.gmra.mrb[0].mxu0 %v40
  %v164 = vpop.f32.mrb[0].mxu0
  %v165 = vadd.f32 0.0, %v164
  %v166 = vpop.f32.mrb[0].mxu0
  %167 = vmatprep.mubr.f32.mxu0 0.0
  %168 = vmatmul.mubr.f32.gmra.mrb[0].mxu0 %v41
  %v169 = vpop.f32.mrb[0].mxu0
  %v170 = vadd.f32 0.0, %v169
  %v171 = vpop.f32.mrb[0].mxu0
  %172 = vmatprep.mubr.f32.mxu0 0.0
  %173 = vmatmul.mubr.f32.gmra.mrb[0].mxu0 %v42
  %v174 = vpop.f32.mrb[0].mxu0
  %v175 = vadd.f32 0.0, %v174
  %v176 = vpop.f32.mrb[0].mxu0
  %177 = vmatprep.mubr.f32.mxu0 0.0
  %178 = vmatmul.mubr.f32.gmra.mrb[0].mxu0 %v43
  %v179 = vpop.f32.mrb[0].mxu0
  %v180 = vadd.f32 0.0, %v179
  %v181 = vpop.f32.mrb[0].mxu0
  %182 = vmatprep.mubr.f32.mxu0 0.0
  %183 = vmatmul.mubr.f32.gmra.mrb[0].mxu0 %v44
  %v184 = vpop.f32.mrb[0].mxu0
  %v185 = vadd.f32 0.0, %v184
  %v186 = vpop.f32.mrb[0].mxu0
  %187 = vmatprep.mubr.f32.mxu0 0.0
  %188 = vmatmul.mubr.f32.gmra.mrb[0].mxu0 %v45
  %v189 = vpop.f32.mrb[0].mxu0
  %v190 = vadd.f32 0.0, %v189
  %v191 = vpop.f32.mrb[0].mxu0
  %192 = vmatprep.mubr.f32.mxu0 0.0
  %193 = vmatmul.mubr.f32.gmra.mrb[0].mxu0 %v46
  %v194 = vpop.f32.mrb[0].mxu0
  %v195 = vadd.f32 0.0, %v194
  %v196 = vpop.f32.mrb[0].mxu0
  %197 = vmatprep.mubr.f32.mxu0 0.0
  %198 = vmatmul.mubr.f32.gmra.mrb[0].mxu0 %v47
  %v199 = vpop.f32.mrb[0].mxu0
  %v200 = vadd.f32 0.0, %v199
  %v201 = vpop.f32.mrb[0].mxu0
  %202 = vmatprep.mubr.f32.mxu0 0.0
  %203 = vmatmul.mubr.f32.gmra.mrb[0].mxu0 %v48
  %v204 = vpop.f32.mrb[0].mxu0
  %v205 = vadd.f32 0.0, %v204
  %v206 = vpop.f32.mrb[0].mxu0
  %207 = vmatprep.mubr.f32.mxu0 0.0
  %208 = vmatmul.mubr.f32.gmra.mrb[0].mxu0 %v49
  %v209 = vpop.f32.mrb[0].mxu0
  %v210 = vadd.f32 0.0, %v209
  %v211 = vpop.f32.mrb[0].mxu0
  %212 = vdwg.mxu0
  %p213 = scmp.eq.s32.totalorder 0, 0
  // Predicated region
  $region14: #{step.4} parent=0 // pred_check
    %p214 = pneg %p213
  $region15: #{step.4} parent=0 // pred_check_branch
    %216 = sbr.rel (%p214) target = $region17
  $region16: #{step.4} parent=0 // pred_region
    %217 = vst [vmem:[#allocation2] sm:$0xff] %v135
    %218 = vst [vmem:[#allocation2 + $0x8] sm:$0xff] %v140
    %219 = vst [vmem:[#allocation2 + $0x10] sm:$0xff] %v145
    %220 = vst [vmem:[#allocation2 + $0x18] sm:$0xff] %v150
    %221 = vst [vmem:[#allocation2 + $0x20] sm:$0xff] %v155
    %222 = vst [vmem:[#allocation2 + $0x28] sm:$0xff] %v160
    %223 = vst [vmem:[#allocation2 + $0x30] sm:$0xff] %v165
    %224 = vst [vmem:[#allocation2 + $0x38] sm:$0xff] %v170
    %225 = vst [vmem:[#allocation2 + $0x40] sm:$0xff] %v175
    %226 = vst [vmem:[#allocation2 + $0x48] sm:$0xff] %v180
    %227 = vst [vmem:[#allocation2 + $0x50] sm:$0xff] %v185
    %228 = vst [vmem:[#allocation2 + $0x58] sm:$0xff] %v190
    %229 = vst [vmem:[#allocation2 + $0x60] sm:$0xff] %v195
    %230 = vst [vmem:[#allocation2 + $0x68] sm:$0xff] %v200
    %231 = vst [vmem:[#allocation2 + $0x70] sm:$0xff] %v205
    %232 = vst [vmem:[#allocation2 + $0x78] sm:$0xff] %v210
  $region17: #{step.4} parent=0 // pred_fallthru
    _
  %p233 = scmp.gt.s32.totalorder 0, 0
  // Predicated region
  $region18: #{step.4} parent=0 // pred_check
    %p234 = pneg %p233
  $region19: #{step.4} parent=0 // pred_check_branch
    %236 = sbr.rel (%p234) target = $region21
  $region20: #{step.4} parent=0 // pred_region
    %v237 = vld [vmem:[#allocation2] sm:$0xff]
    %v238 = vld [vmem:[#allocation2 + $0x8] sm:$0xff]
    %v239 = vld [vmem:[#allocation2 + $0x10] sm:$0xff]
    %v240 = vld [vmem:[#allocation2 + $0x18] sm:$0xff]
    %v241 = vld [vmem:[#allocation2 + $0x20] sm:$0xff]
    %v242 = vld [vmem:[#allocation2 + $0x28] sm:$0xff]
    %v243 = vld [vmem:[#allocation2 + $0x30] sm:$0xff]
    %v244 = vld [vmem:[#allocation2 + $0x38] sm:$0xff]
    %v245 = vld [vmem:[#allocation2 + $0x40] sm:$0xff]
    %v246 = vld [vmem:[#allocation2 + $0x48] sm:$0xff]
    %v247 = vld [vmem:[#allocation2 + $0x50] sm:$0xff]
    %v248 = vld [vmem:[#allocation2 + $0x58] sm:$0xff]
    %v249 = vld [vmem:[#allocation2 + $0x60] sm:$0xff]
    %v250 = vld [vmem:[#allocation2 + $0x68] sm:$0xff]
    %v251 = vld [vmem:[#allocation2 + $0x70] sm:$0xff]
    %v252 = vld [vmem:[#allocation2 + $0x78] sm:$0xff]
    %v253 = vadd.f32 %v237, %v135
    %v254 = vadd.f32 %v238, %v140
    %v255 = vadd.f32 %v239, %v145
    %v256 = vadd.f32 %v240, %v150
    %v257 = vadd.f32 %v241, %v155
    %v258 = vadd.f32 %v242, %v160
    %v259 = vadd.f32 %v243, %v165
    %v260 = vadd.f32 %v244, %v170
    %v261 = vadd.f32 %v245, %v175
    %v262 = vadd.f32 %v246, %v180
    %v263 = vadd.f32 %v247, %v185
    %v264 = vadd.f32 %v248, %v190
    %v265 = vadd.f32 %v249, %v195
    %v266 = vadd.f32 %v250, %v200
    %v267 = vadd.f32 %v251, %v205
    %v268 = vadd.f32 %v252, %v210
    %269 = vst [vmem:[#allocation2] sm:$0xff] %v253
    %270 = vst [vmem:[#allocation2 + $0x8] sm:$0xff] %v254
    %271 = vst [vmem:[#allocation2 + $0x10] sm:$0xff] %v255
    %272 = vst [vmem:[#allocation2 + $0x18] sm:$0xff] %v256
    %273 = vst [vmem:[#allocation2 + $0x20] sm:$0xff] %v257
    %274 = vst [vmem:[#allocation2 + $0x28] sm:$0xff] %v258
    %275 = vst [vmem:[#allocation2 + $0x30] sm:$0xff] %v259
    %276 = vst [vmem:[#allocation2 + $0x38] sm:$0xff] %v260
    %277 = vst [vmem:[#allocation2 + $0x40] sm:$0xff] %v261
    %278 = vst [vmem:[#allocation2 + $0x48] sm:$0xff] %v262
    %279 = vst [vmem:[#allocation2 + $0x50] sm:$0xff] %v263
    %280 = vst [vmem:[#allocation2 + $0x58] sm:$0xff] %v264
    %281 = vst [vmem:[#allocation2 + $0x60] sm:$0xff] %v265
    %282 = vst [vmem:[#allocation2 + $0x68] sm:$0xff] %v266
    %283 = vst [vmem:[#allocation2 + $0x70] sm:$0xff] %v267
    %284 = vst [vmem:[#allocation2 + $0x78] sm:$0xff] %v268
  $region21: #{step.4} parent=0 // pred_fallthru
    _
  // Predicated region
  $region22: #{step.4} parent=0 // pred_check
    %p285 = pneg %p213
  $region23: #{step.4} parent=0 // pred_check_branch
    %287 = sbr.rel (%p285) target = $region25
  $region24: #{step.4} parent=0 // pred_region
    %v288 = vld [vmem:[#allocation2] sm:$0xff]
    %v289 = vld [vmem:[#allocation2 + $0x8] sm:$0xff]
    %v290 = vld [vmem:[#allocation2 + $0x10] sm:$0xff]
    %v291 = vld [vmem:[#allocation2 + $0x18] sm:$0xff]
    %v292 = vld [vmem:[#allocation2 + $0x20] sm:$0xff]
    %v293 = vld [vmem:[#allocation2 + $0x28] sm:$0xff]
    %v294 = vld [vmem:[#allocation2 + $0x30] sm:$0xff]
    %v295 = vld [vmem:[#allocation2 + $0x38] sm:$0xff]
    %v296 = vld [vmem:[#allocation2 + $0x40] sm:$0xff]
    %v297 = vld [vmem:[#allocation2 + $0x48] sm:$0xff]
    %v298 = vld [vmem:[#allocation2 + $0x50] sm:$0xff]
    %v299 = vld [vmem:[#allocation2 + $0x58] sm:$0xff]
    %v300 = vld [vmem:[#allocation2 + $0x60] sm:$0xff]
    %v301 = vld [vmem:[#allocation2 + $0x68] sm:$0xff]
    %v302 = vld [vmem:[#allocation2 + $0x70] sm:$0xff]
    %v303 = vld [vmem:[#allocation2 + $0x78] sm:$0xff]
    %v304 = vld [vmem:[%s2] sm:$0x1]
    %v306 = vlaneseq
    %v307 = vshrl.u32 %v306, 7
    %v308 = vsub.s32 0, %v307
    %v309 = vrot.slane %v304, %v308
    %v311 = vadd.f32 %v288, %v309
    %v312 = vadd.f32 %v289, %v309
    %v313 = vadd.f32 %v290, %v309
    %v314 = vadd.f32 %v291, %v309
    %v315 = vadd.f32 %v292, %v309
    %v316 = vadd.f32 %v293, %v309
    %v317 = vadd.f32 %v294, %v309
    %v318 = vadd.f32 %v295, %v309
    %v319 = vadd.f32 %v296, %v309
    %v320 = vadd.f32 %v297, %v309
    %v321 = vadd.f32 %v298, %v309
    %v322 = vadd.f32 %v299, %v309
    %v323 = vadd.f32 %v300, %v309
    %v324 = vadd.f32 %v301, %v309
    %v325 = vadd.f32 %v302, %v309
    %v326 = vadd.f32 %v303, %v309
    %327 = vst [vmem:[%s3] sm:$0xff] %v311
    %328 = vst [vmem:[%s3 + $0x8] sm:$0xff] %v312
    %329 = vst [vmem:[%s3 + $0x10] sm:$0xff] %v313
    %330 = vst [vmem:[%s3 + $0x18] sm:$0xff] %v314
    %331 = vst [vmem:[%s3 + $0x20] sm:$0xff] %v315
    %332 = vst [vmem:[%s3 + $0x28] sm:$0xff] %v316
    %333 = vst [vmem:[%s3 + $0x30] sm:$0xff] %v317
    %334 = vst [vmem:[%s3 + $0x38] sm:$0xff] %v318
    %335 = vst [vmem:[%s3 + $0x40] sm:$0xff] %v319
    %336 = vst [vmem:[%s3 + $0x48] sm:$0xff] %v320
    %337 = vst [vmem:[%s3 + $0x50] sm:$0xff] %v321
    %338 = vst [vmem:[%s3 + $0x58] sm:$0xff] %v322
    %339 = vst [vmem:[%s3 + $0x60] sm:$0xff] %v323
    %340 = vst [vmem:[%s3 + $0x68] sm:$0xff] %v324
    %341 = vst [vmem:[%s3 + $0x70] sm:$0xff] %v325
    %342 = vst [vmem:[%s3 + $0x78] sm:$0xff] %v326
  $region25: #{step.4} parent=0 // pred_fallthru
    _
  // Predicated region
  $region26: #{step.4} parent=0 // pred_check
    _
  $region27: #{step.4} parent=0 // pred_check_branch
    %344 = sbr.rel (0) target = $region29
  $region28: #{step.4} parent=0 // pred_region
    _
  $region29: #{step.4} parent=0 // pred_fallthru
    _
  // Predicated region
  $region30: #{step.4} parent=0 // pred_check
    _
  $region31: #{step.4} parent=0 // pred_check_branch
    %346 = sbr.rel (0) target = $region33
  $region32: #{step.4} parent=0 // pred_region
    _
  $region33: #{step.4} parent=0 // pred_fallthru
    _

// kernel: step.3
$region0: #{step.3}
  #allocation0 [shape = 'u32[]', space=smem, size = 0x4, offset = 0x4, fixed_abs, tag = 'smem constant byte address 0x4 - core index']
  #allocation1 [shape = 'u32[144,128]{1,0:T(1,128)}', space=vmem, size = 0x12000, scoped, tag = 'internal scratch']
  #allocation2 [shape = 'f32[128,128]{1,0:T(8,128)}', space=vmem, size = 0x10000, scoped, tag = 'scratch operand']
  %s0 = inlined_call_operand.vmem [shape: s8[128,128], index: 0, kind: input, shape index: {}]
  %s1 = inlined_call_operand.vmem [shape: f32[128,128], index: 1, kind: input, shape index: {}]
  %s2 = inlined_call_operand.vmem [shape: f32[1,128], index: 2, kind: input, shape index: {}]
  %s3 = inlined_call_operand.vmem [shape: f32[128,128], index: 3, kind: input, shape index: {}]
  %s4 = inlined_call_operand.vmem [shape: f32[128,128], index: 4, kind: output, shape index: {}]
  %s5 = sld [smem:[#allocation0]]
  $region38: #{step.3} parent=0
    _
  %s7 = ssub.s32 1, %s5
  %s8 = scalar_select 0, %s7, %s5
  // Predicated region
  $region2: #{step.3} parent=0 // pred_check
    _
  $region3: #{step.3} parent=0 // pred_check_branch
    %10 = sbr.rel (0) target = $region5
  $region4: #{step.3} parent=0 // pred_region
    _
  $region5: #{step.3} parent=0 // pred_fallthru
    _
  // Predicated region
  $region6: #{step.3} parent=0 // pred_check
    _
  $region7: #{step.3} parent=0 // pred_check_branch
    %12 = sbr.rel (0) target = $region9
  $region8: #{step.3} parent=0 // pred_region
    _
  $region9: #{step.3} parent=0 // pred_fallthru
    _
  // Predicated region
  $region10: #{step.3} parent=0 // pred_check
    _
  $region11: #{step.3} parent=0 // pred_check_branch
    %14 = sbr.rel (0) target = $region13
  $region12: #{step.3} parent=0 // pred_region
    _
  $region13: #{step.3} parent=0 // pred_fallthru
    _
  // Predicated region
  $region14: #{step.3} parent=0 // pred_check
    _
  $region15: #{step.3} parent=0 // pred_check_branch
    %16 = sbr.rel (0) target = $region17
  $region16: #{step.3} parent=0 // pred_region
    _
  $region17: #{step.3} parent=0 // pred_fallthru
    _
  %v17 = vld [vmem:[%s0] sm:$0xff]
  %v18 = vld [vmem:[%s0 + $0x8] sm:$0xff]
  %v19 = vld [vmem:[%s0 + $0x10] sm:$0xff]
  %v20 = vld [vmem:[%s0 + $0x18] sm:$0xff]
  %v21 = vunpack.c.0.s8 %v17
  %v22 = vunpack.c.1.s8 %v17
  %v23 = vunpack.c.2.s8 %v17
  %v24 = vunpack.c.3.s8 %v17
  %v25 = vunpack.c.0.s8 %v18
  %v26 = vunpack.c.1.s8 %v18
  %v27 = vunpack.c.2.s8 %v18
  %v28 = vunpack.c.3.s8 %v18
  %v29 = vunpack.c.0.s8 %v19
  %v30 = vunpack.c.1.s8 %v19
  %v31 = vunpack.c.2.s8 %v19
  %v32 = vunpack.c.3.s8 %v19
  %v33 = vunpack.c.0.s8 %v20
  %v34 = vunpack.c.1.s8 %v20
  %v35 = vunpack.c.2.s8 %v20
  %v36 = vunpack.c.3.s8 %v20
  %v37 = vcvt.s32.f32 %v21
  %v38 = vcvt.s32.f32 %v22
  %v39 = vcvt.s32.f32 %v23
  %v40 = vcvt.s32.f32 %v24
  %v41 = vcvt.s32.f32 %v25
  %v42 = vcvt.s32.f32 %v26
  %v43 = vcvt.s32.f32 %v27
  %v44 = vcvt.s32.f32 %v28
  %v45 = vcvt.s32.f32 %v29
  %v46 = vcvt.s32.f32 %v30
  %v47 = vcvt.s32.f32 %v31
  %v48 = vcvt.s32.f32 %v32
  %v49 = vcvt.s32.f32 %v33
  %v50 = vcvt.s32.f32 %v34
  %v51 = vcvt.s32.f32 %v35
  %v52 = vcvt.s32.f32 %v36
  %s53 = smul.u32 0, 128
  %s54 = scalar_lea.vmem %s1, %s53
  %v55 = vld [vmem:[%s54] sm:$0xff]
  %v56 = vld [vmem:[%s54 + $0x8] sm:$0xff]
  %v57 = vld [vmem:[%s54 + $0x10] sm:$0xff]
  %v58 = vld [vmem:[%s54 + $0x18] sm:$0xff]
  %v59 = vld [vmem:[%s54 + $0x20] sm:$0xff]
  %v60 = vld [vmem:[%s54 + $0x28] sm:$0xff]
  %v61 = vld [vmem:[%s54 + $0x30] sm:$0xff]
  %v62 = vld [vmem:[%s54 + $0x38] sm:$0xff]
  %v63 = vld [vmem:[%s54 + $0x40] sm:$0xff]
  %v64 = vld [vmem:[%s54 + $0x48] sm:$0xff]
  %v65 = vld [vmem:[%s54 + $0x50] sm:$0xff]
  %v66 = vld [vmem:[%s54 + $0x58] sm:$0xff]
  %v67 = vld [vmem:[%s54 + $0x60] sm:$0xff]
  %v68 = vld [vmem:[%s54 + $0x68] sm:$0xff]
  %v69 = vld [vmem:[%s54 + $0x70] sm:$0xff]
  %v70 = vld [vmem:[%s54 + $0x78] sm:$0xff]
  %71 = vmatprep.subr.mxu0 0.0
  %72 = vmatpush1.msra.mxu0 %v55
  %73 = vmatprep.subr.mxu0 0.0
  %74 = vmatpush1.msra.mxu0 %v56
  %75 = vmatprep.subr.mxu0 0.0
  %76 = vmatpush1.msra.mxu0 %v57
  %77 = vmatprep.subr.mxu0 0.0
  %78 = vmatpush1.msra.mxu0 %v58
  %79 = vmatprep.subr.mxu0 0.0
  %80 = vmatpush1.msra.mxu0 %v59
  %81 = vmatprep.subr.mxu0 0.0
  %82 = vmatpush1.msra.mxu0 %v60
  %83 = vmatprep.subr.mxu0 0.0
  %84 = vmatpush1.msra.mxu0 %v61
  %85 = vmatprep.subr.mxu0 0.0
  %86 = vmatpush1.msra.mxu0 %v62
  %87 = vmatprep.subr.mxu0 0.0
  %88 = vmatpush1.msra.mxu0 %v63
  %89 = vmatprep.subr.mxu0 0.0
  %90 = vmatpush1.msra.mxu0 %v64
  %91 = vmatprep.subr.mxu0 0.0
  %92 = vmatpush1.msra.mxu0 %v65
  %93 = vmatprep.subr.mxu0 0.0
  %94 = vmatpush1.msra.mxu0 %v66
  %95 = vmatprep.subr.mxu0 0.0
  %96 = vmatpush1.msra.mxu0 %v67
  %97 = vmatprep.subr.mxu0 0.0
  %98 = vmatpush1.msra.mxu0 %v68
  %99 = vmatprep.subr.mxu0 0.0
  %100 = vmatpush1.msra.mxu0 %v69
  %101 = vmatprep.subr.mxu0 0.0
  %102 = vmatpush1.msra.mxu0 %v70
  %103 = vmatprep.subr.mxu0 0.0
  %104 = vmatpush1.msra.mxu0 0.0
  %105 = vmatprep.subr.mxu0 0.0
  %106 = vmatpush1.msra.mxu0 0.0
  %107 = vmatprep.subr.mxu0 0.0
  %108 = vmatpush1.msra.mxu0 0.0
  %109 = vmatprep.subr.mxu0 0.0
  %110 = vmatpush1.msra.mxu0 0.0
  %111 = vmatprep.subr.mxu0 0.0
  %112 = vmatpush1.msra.mxu0 0.0
  %113 = vmatprep.subr.mxu0 0.0
  %114 = vmatpush1.msra.mxu0 0.0
  %115 = vmatprep.subr.mxu0 0.0
  %116 = vmatpush1.msra.mxu0 0.0
  %117 = vmatprep.subr.mxu0 0.0
  %118 = vmatpush1.msra.mxu0 0.0
  %119 = vmatprep.subr.mxu0 0.0
  %120 = vmatpush1.msra.mxu0 0.0
  %121 = vmatprep.subr.mxu0 0.0
  %122 = vmatpush1.msra.mxu0 0.0
  %123 = vmatprep.subr.mxu0 0.0
  %124 = vmatpush1.msra.mxu0 0.0
  %125 = vmatprep.subr.mxu0 0.0
  %126 = vmatpush1.msra.mxu0 0.0
  %127 = vmatprep.subr.mxu0 0.0
  %128 = vmatpush1.msra.mxu0 0.0
  %129 = vmatprep.subr.mxu0 0.0
  %130 = vmatpush1.msra.mxu0 0.0
  %131 = vmatprep.subr.mxu0 0.0
  %132 = vmatpush1.msra.mxu0 0.0
  %133 = vmatprep.subr.mxu0 0.0
  %134 = vmatpush1.msra.mxu0 0.0
  %135 = vmatprep.mubr.f32.mxu0 0.0
  %136 = vmatmul.mubr.f32.gmra.mrb[0].mxu0 %v37
  %v137 = vpop.f32.mrb[0].mxu0
  %v138 = vadd.f32 0.0, %v137
  %v139 = vpop.f32.mrb[0].mxu0
  %140 = vmatprep.mubr.f32.mxu0 0.0
  %141 = vmatmul.mubr.f32.gmra.mrb[0].mxu0 %v38
  %v142 = vpop.f32.mrb[0].mxu0
  %v143 = vadd.f32 0.0, %v142
  %v144 = vpop.f32.mrb[0].mxu0
  %145 = vmatprep.mubr.f32.mxu0 0.0
  %146 = vmatmul.mubr.f32.gmra.mrb[0].mxu0 %v39
  %v147 = vpop.f32.mrb[0].mxu0
  %v148 = vadd.f32 0.0, %v147
  %v149 = vpop.f32.mrb[0].mxu0
  %150 = vmatprep.mubr.f32.mxu0 0.0
  %151 = vmatmul.mubr.f32.gmra.mrb[0].mxu0 %v40
  %v152 = vpop.f32.mrb[0].mxu0
  %v153 = vadd.f32 0.0, %v152
  %v154 = vpop.f32.mrb[0].mxu0
  %155 = vmatprep.mubr.f32.mxu0 0.0
  %156 = vmatmul.mubr.f32.gmra.mrb[0].mxu0 %v41
  %v157 = vpop.f32.mrb[0].mxu0
  %v158 = vadd.f32 0.0, %v157
  %v159 = vpop.f32.mrb[0].mxu0
  %160 = vmatprep.mubr.f32.mxu0 0.0
  %161 = vmatmul.mubr.f32.gmra.mrb[0].mxu0 %v42
  %v162 = vpop.f32.mrb[0].mxu0
  %v163 = vadd.f32 0.0, %v162
  %v164 = vpop.f32.mrb[0].mxu0
  %165 = vmatprep.mubr.f32.mxu0 0.0
  %166 = vmatmul.mubr.f32.gmra.mrb[0].mxu0 %v43
  %v167 = vpop.f32.mrb[0].mxu0
  %v168 = vadd.f32 0.0, %v167
  %v169 = vpop.f32.mrb[0].mxu0
  %170 = vmatprep.mubr.f32.mxu0 0.0
  %171 = vmatmul.mubr.f32.gmra.mrb[0].mxu0 %v44
  %v172 = vpop.f32.mrb[0].mxu0
  %v173 = vadd.f32 0.0, %v172
  %v174 = vpop.f32.mrb[0].mxu0
  %175 = vmatprep.mubr.f32.mxu0 0.0
  %176 = vmatmul.mubr.f32.gmra.mrb[0].mxu0 %v45
  %v177 = vpop.f32.mrb[0].mxu0
  %v178 = vadd.f32 0.0, %v177
  %v179 = vpop.f32.mrb[0].mxu0
  %180 = vmatprep.mubr.f32.mxu0 0.0
  %181 = vmatmul.mubr.f32.gmra.mrb[0].mxu0 %v46
  %v182 = vpop.f32.mrb[0].mxu0
  %v183 = vadd.f32 0.0, %v182
  %v184 = vpop.f32.mrb[0].mxu0
  %185 = vmatprep.mubr.f32.mxu0 0.0
  %186 = vmatmul.mubr.f32.gmra.mrb[0].mxu0 %v47
  %v187 = vpop.f32.mrb[0].mxu0
  %v188 = vadd.f32 0.0, %v187
  %v189 = vpop.f32.mrb[0].mxu0
  %190 = vmatprep.mubr.f32.mxu0 0.0
  %191 = vmatmul.mubr.f32.gmra.mrb[0].mxu0 %v48
  %v192 = vpop.f32.mrb[0].mxu0
  %v193 = vadd.f32 0.0, %v192
  %v194 = vpop.f32.mrb[0].mxu0
  %195 = vmatprep.mubr.f32.mxu0 0.0
  %196 = vmatmul.mubr.f32.gmra.mrb[0].mxu0 %v49
  %v197 = vpop.f32.mrb[0].mxu0
  %v198 = vadd.f32 0.0, %v197
  %v199 = vpop.f32.mrb[0].mxu0
  %200 = vmatprep.mubr.f32.mxu0 0.0
  %201 = vmatmul.mubr.f32.gmra.mrb[0].mxu0 %v50
  %v202 = vpop.f32.mrb[0].mxu0
  %v203 = vadd.f32 0.0, %v202
  %v204 = vpop.f32.mrb[0].mxu0
  %205 = vmatprep.mubr.f32.mxu0 0.0
  %206 = vmatmul.mubr.f32.gmra.mrb[0].mxu0 %v51
  %v207 = vpop.f32.mrb[0].mxu0
  %v208 = vadd.f32 0.0, %v207
  %v209 = vpop.f32.mrb[0].mxu0
  %210 = vmatprep.mubr.f32.mxu0 0.0
  %211 = vmatmul.mubr.f32.gmra.mrb[0].mxu0 %v52
  %v212 = vpop.f32.mrb[0].mxu0
  %v213 = vadd.f32 0.0, %v212
  %v214 = vpop.f32.mrb[0].mxu0
  %215 = vdwg.mxu0
  %p216 = scmp.eq.s32.totalorder 0, 0
  // Predicated region
  $region18: #{step.3} parent=0 // pred_check
    %p217 = pneg %p216
  $region19: #{step.3} parent=0 // pred_check_branch
    %219 = sbr.rel (%p217) target = $region21
  $region20: #{step.3} parent=0 // pred_region
    %220 = vst [vmem:[#allocation2] sm:$0xff] %v138
    %221 = vst [vmem:[#allocation2 + $0x8] sm:$0xff] %v143
    %222 = vst [vmem:[#allocation2 + $0x10] sm:$0xff] %v148
    %223 = vst [vmem:[#allocation2 + $0x18] sm:$0xff] %v153
    %224 = vst [vmem:[#allocation2 + $0x20] sm:$0xff] %v158
    %225 = vst [vmem:[#allocation2 + $0x28] sm:$0xff] %v163
    %226 = vst [vmem:[#allocation2 + $0x30] sm:$0xff] %v168
    %227 = vst [vmem:[#allocation2 + $0x38] sm:$0xff] %v173
    %228 = vst [vmem:[#allocation2 + $0x40] sm:$0xff] %v178
    %229 = vst [vmem:[#allocation2 + $0x48] sm:$0xff] %v183
    %230 = vst [vmem:[#allocation2 + $0x50] sm:$0xff] %v188
    %231 = vst [vmem:[#allocation2 + $0x58] sm:$0xff] %v193
    %232 = vst [vmem:[#allocation2 + $0x60] sm:$0xff] %v198
    %233 = vst [vmem:[#allocation2 + $0x68] sm:$0xff] %v203
    %234 = vst [vmem:[#allocation2 + $0x70] sm:$0xff] %v208
    %235 = vst [vmem:[#allocation2 + $0x78] sm:$0xff] %v213
  $region21: #{step.3} parent=0 // pred_fallthru
    _
  %p236 = scmp.gt.s32.totalorder 0, 0
  // Predicated region
  $region22: #{step.3} parent=0 // pred_check
    %p237 = pneg %p236
  $region23: #{step.3} parent=0 // pred_check_branch
    %239 = sbr.rel (%p237) target = $region25
  $region24: #{step.3} parent=0 // pred_region
    %v240 = vld [vmem:[#allocation2] sm:$0xff]
    %v241 = vld [vmem:[#allocation2 + $0x8] sm:$0xff]
    %v242 = vld [vmem:[#allocation2 + $0x10] sm:$0xff]
    %v243 = vld [vmem:[#allocation2 + $0x18] sm:$0xff]
    %v244 = vld [vmem:[#allocation2 + $0x20] sm:$0xff]
    %v245 = vld [vmem:[#allocation2 + $0x28] sm:$0xff]
    %v246 = vld [vmem:[#allocation2 + $0x30] sm:$0xff]
    %v247 = vld [vmem:[#allocation2 + $0x38] sm:$0xff]
    %v248 = vld [vmem:[#allocation2 + $0x40] sm:$0xff]
    %v249 = vld [vmem:[#allocation2 + $0x48] sm:$0xff]
    %v250 = vld [vmem:[#allocation2 + $0x50] sm:$0xff]
    %v251 = vld [vmem:[#allocation2 + $0x58] sm:$0xff]
    %v252 = vld [vmem:[#allocation2 + $0x60] sm:$0xff]
    %v253 = vld [vmem:[#allocation2 + $0x68] sm:$0xff]
    %v254 = vld [vmem:[#allocation2 + $0x70] sm:$0xff]
    %v255 = vld [vmem:[#allocation2 + $0x78] sm:$0xff]
    %v256 = vadd.f32 %v240, %v138
    %v257 = vadd.f32 %v241, %v143
    %v258 = vadd.f32 %v242, %v148
    %v259 = vadd.f32 %v243, %v153
    %v260 = vadd.f32 %v244, %v158
    %v261 = vadd.f32 %v245, %v163
    %v262 = vadd.f32 %v246, %v168
    %v263 = vadd.f32 %v247, %v173
    %v264 = vadd.f32 %v248, %v178
    %v265 = vadd.f32 %v249, %v183
    %v266 = vadd.f32 %v250, %v188
    %v267 = vadd.f32 %v251, %v193
    %v268 = vadd.f32 %v252, %v198
    %v269 = vadd.f32 %v253, %v203
    %v270 = vadd.f32 %v254, %v208
    %v271 = vadd.f32 %v255, %v213
    %272 = vst [vmem:[#allocation2] sm:$0xff] %v256
    %273 = vst [vmem:[#allocation2 + $0x8] sm:$0xff] %v257
    %274 = vst [vmem:[#allocation2 + $0x10] sm:$0xff] %v258
    %275 = vst [vmem:[#allocation2 + $0x18] sm:$0xff] %v259
    %276 = vst [vmem:[#allocation2 + $0x20] sm:$0xff] %v260
    %277 = vst [vmem:[#allocation2 + $0x28] sm:$0xff] %v261
    %278 = vst [vmem:[#allocation2 + $0x30] sm:$0xff] %v262
    %279 = vst [vmem:[#allocation2 + $0x38] sm:$0xff] %v263
    %280 = vst [vmem:[#allocation2 + $0x40] sm:$0xff] %v264
    %281 = vst [vmem:[#allocation2 + $0x48] sm:$0xff] %v265
    %282 = vst [vmem:[#allocation2 + $0x50] sm:$0xff] %v266
    %283 = vst [vmem:[#allocation2 + $0x58] sm:$0xff] %v267
    %284 = vst [vmem:[#allocation2 + $0x60] sm:$0xff] %v268
    %285 = vst [vmem:[#allocation2 + $0x68] sm:$0xff] %v269
    %286 = vst [vmem:[#allocation2 + $0x70] sm:$0xff] %v270
    %287 = vst [vmem:[#allocation2 + $0x78] sm:$0xff] %v271
  $region25: #{step.3} parent=0 // pred_fallthru
    _
  // Predicated region
  $region26: #{step.3} parent=0 // pred_check
    %p288 = pneg %p216
  $region27: #{step.3} parent=0 // pred_check_branch
    %290 = sbr.rel (%p288) target = $region29
  $region28: #{step.3} parent=0 // pred_region
    %v291 = vld [vmem:[#allocation2] sm:$0xff]
    %v292 = vld [vmem:[#allocation2 + $0x8] sm:$0xff]
    %v293 = vld [vmem:[#allocation2 + $0x10] sm:$0xff]
    %v294 = vld [vmem:[#allocation2 + $0x18] sm:$0xff]
    %v295 = vld [vmem:[#allocation2 + $0x20] sm:$0xff]
    %v296 = vld [vmem:[#allocation2 + $0x28] sm:$0xff]
    %v297 = vld [vmem:[#allocation2 + $0x30] sm:$0xff]
    %v298 = vld [vmem:[#allocation2 + $0x38] sm:$0xff]
    %v299 = vld [vmem:[#allocation2 + $0x40] sm:$0xff]
    %v300 = vld [vmem:[#allocation2 + $0x48] sm:$0xff]
    %v301 = vld [vmem:[#allocation2 + $0x50] sm:$0xff]
    %v302 = vld [vmem:[#allocation2 + $0x58] sm:$0xff]
    %v303 = vld [vmem:[#allocation2 + $0x60] sm:$0xff]
    %v304 = vld [vmem:[#allocation2 + $0x68] sm:$0xff]
    %v305 = vld [vmem:[#allocation2 + $0x70] sm:$0xff]
    %v306 = vld [vmem:[#allocation2 + $0x78] sm:$0xff]
    %v307 = vld [vmem:[%s2] sm:$0x1]
    %v309 = vlaneseq
    %v310 = vshrl.u32 %v309, 7
    %v311 = vsub.s32 0, %v310
    %v312 = vrot.slane %v307, %v311
    %v314 = vadd.f32 %v291, %v312
    %v315 = vadd.f32 %v292, %v312
    %v316 = vadd.f32 %v293, %v312
    %v317 = vadd.f32 %v294, %v312
    %v318 = vadd.f32 %v295, %v312
    %v319 = vadd.f32 %v296, %v312
    %v320 = vadd.f32 %v297, %v312
    %v321 = vadd.f32 %v298, %v312
    %v322 = vadd.f32 %v299, %v312
    %v323 = vadd.f32 %v300, %v312
    %v324 = vadd.f32 %v301, %v312
    %v325 = vadd.f32 %v302, %v312
    %v326 = vadd.f32 %v303, %v312
    %v327 = vadd.f32 %v304, %v312
    %v328 = vadd.f32 %v305, %v312
    %v329 = vadd.f32 %v306, %v312
    %v330 = vmax.f32 %v314, 0.0
    %v331 = vmax.f32 %v315, 0.0
    %v332 = vmax.f32 %v316, 0.0
    %v333 = vmax.f32 %v317, 0.0
    %v334 = vmax.f32 %v318, 0.0
    %v335 = vmax.f32 %v319, 0.0
    %v336 = vmax.f32 %v320, 0.0
    %v337 = vmax.f32 %v321, 0.0
    %v338 = vmax.f32 %v322, 0.0
    %v339 = vmax.f32 %v323, 0.0
    %v340 = vmax.f32 %v324, 0.0
    %v341 = vmax.f32 %v325, 0.0
    %v342 = vmax.f32 %v326, 0.0
    %v343 = vmax.f32 %v327, 0.0
    %v344 = vmax.f32 %v328, 0.0
    %v345 = vmax.f32 %v329, 0.0
    %v346 = vld [vmem:[%s3] sm:$0xff]
    %v347 = vld [vmem:[%s3 + $0x8] sm:$0xff]
    %v348 = vld [vmem:[%s3 + $0x10] sm:$0xff]
    %v349 = vld [vmem:[%s3 + $0x18] sm:$0xff]
    %v350 = vld [vmem:[%s3 + $0x20] sm:$0xff]
    %v351 = vld [vmem:[%s3 + $0x28] sm:$0xff]
    %v352 = vld [vmem:[%s3 + $0x30] sm:$0xff]
    %v353 = vld [vmem:[%s3 + $0x38] sm:$0xff]
    %v354 = vld [vmem:[%s3 + $0x40] sm:$0xff]
    %v355 = vld [vmem:[%s3 + $0x48] sm:$0xff]
    %v356 = vld [vmem:[%s3 + $0x50] sm:$0xff]
    %v357 = vld [vmem:[%s3 + $0x58] sm:$0xff]
    %v358 = vld [vmem:[%s3 + $0x60] sm:$0xff]
    %v359 = vld [vmem:[%s3 + $0x68] sm:$0xff]
    %v360 = vld [vmem:[%s3 + $0x70] sm:$0xff]
    %v361 = vld [vmem:[%s3 + $0x78] sm:$0xff]
    %362 = vmatprep.subr.mxu0 0.0
    %363 = vmatpush1.msra.mxu0 %v346
    %364 = vmatprep.subr.mxu0 0.0
    %365 = vmatpush1.msra.mxu0 %v347
    %366 = vmatprep.subr.mxu0 0.0
    %367 = vmatpush1.msra.mxu0 %v348
    %368 = vmatprep.subr.mxu0 0.0
    %369 = vmatpush1.msra.mxu0 %v349
    %370 = vmatprep.subr.mxu0 0.0
    %371 = vmatpush1.msra.mxu0 %v350
    %372 = vmatprep.subr.mxu0 0.0
    %373 = vmatpush1.msra.mxu0 %v351
    %374 = vmatprep.subr.mxu0 0.0
    %375 = vmatpush1.msra.mxu0 %v352
    %376 = vmatprep.subr.mxu0 0.0
    %377 = vmatpush1.msra.mxu0 %v353
    %378 = vmatprep.subr.mxu0 0.0
    %379 = vmatpush1.msra.mxu0 %v354
    %380 = vmatprep.subr.mxu0 0.0
    %381 = vmatpush1.msra.mxu0 %v355
    %382 = vmatprep.subr.mxu0 0.0
    %383 = vmatpush1.msra.mxu0 %v356
    %384 = vmatprep.subr.mxu0 0.0
    %385 = vmatpush1.msra.mxu0 %v357
    %386 = vmatprep.subr.mxu0 0.0
    %387 = vmatpush1.msra.mxu0 %v358
    %388 = vmatprep.subr.mxu0 0.0
    %389 = vmatpush1.msra.mxu0 %v359
    %390 = vmatprep.subr.mxu0 0.0
    %391 = vmatpush1.msra.mxu0 %v360
    %392 = vmatprep.subr.mxu0 0.0
    %393 = vmatpush1.msra.mxu0 %v361
    %394 = vmatprep.subr.mxu0 0.0
    %395 = vmatpush1.msra.mxu0 0.0
    %396 = vmatprep.subr.mxu0 0.0
    %397 = vmatpush1.msra.mxu0 0.0
    %398 = vmatprep.subr.mxu0 0.0
    %399 = vmatpush1.msra.mxu0 0.0
    %400 = vmatprep.subr.mxu0 0.0
    %401 = vmatpush1.msra.mxu0 0.0
    %402 = vmatprep.subr.mxu0 0.0
    %403 = vmatpush1.msra.mxu0 0.0
    %404 = vmatprep.subr.mxu0 0.0
    %405 = vmatpush1.msra.mxu0 0.0
    %406 = vmatprep.subr.mxu0 0.0
    %407 = vmatpush1.msra.mxu0 0.0
    %408 = vmatprep.subr.mxu0 0.0
    %409 = vmatpush1.msra.mxu0 0.0
    %410 = vmatprep.subr.mxu0 0.0
    %411 = vmatpush1.msra.mxu0 0.0
    %412 = vmatprep.subr.mxu0 0.0
    %413 = vmatpush1.msra.mxu0 0.0
    %414 = vmatprep.subr.mxu0 0.0
    %415 = vmatpush1.msra.mxu0 0.0
    %416 = vmatprep.subr.mxu0 0.0
    %417 = vmatpush1.msra.mxu0 0.0
    %418 = vmatprep.subr.mxu0 0.0
    %419 = vmatpush1.msra.mxu0 0.0
    %420 = vmatprep.subr.mxu0 0.0
    %421 = vmatpush1.msra.mxu0 0.0
    %422 = vmatprep.subr.mxu0 0.0
    %423 = vmatpush1.msra.mxu0 0.0
    %424 = vmatprep.subr.mxu0 0.0
    %425 = vmatpush1.msra.mxu0 0.0
    %426 = vmatprep.mubr.f32.mxu0 0.0
    %427 = vmatmul.mubr.f32.gmra.mrb[0].mxu0 %v330
    %v428 = vpop.f32.mrb[0].mxu0
    %v429 = vadd.f32 0.0, %v428
    %v430 = vpop.f32.mrb[0].mxu0
    %431 = vmatprep.mubr.f32.mxu0 0.0
    %432 = vmatmul.mubr.f32.gmra.mrb[0].mxu0 %v331
    %v433 = vpop.f32.mrb[0].mxu0
    %v434 = vadd.f32 0.0, %v433
    %v435 = vpop.f32.mrb[0].mxu0
    %436 = vmatprep.mubr.f32.mxu0 0.0
    %437 = vmatmul.mubr.f32.gmra.mrb[0].mxu0 %v332
    %v438 = vpop.f32.mrb[0].mxu0
    %v439 = vadd.f32 0.0, %v438
    %v440 = vpop.f32.mrb[0].mxu0
    %441 = vmatprep.mubr.f32.mxu0 0.0
    %442 = vmatmul.mubr.f32.gmra.mrb[0].mxu0 %v333
    %v443 = vpop.f32.mrb[0].mxu0
    %v444 = vadd.f32 0.0, %v443
    %v445 = vpop.f32.mrb[0].mxu0
    %446 = vmatprep.mubr.f32.mxu0 0.0
    %447 = vmatmul.mubr.f32.gmra.mrb[0].mxu0 %v334
    %v448 = vpop.f32.mrb[0].mxu0
    %v449 = vadd.f32 0.0, %v448
    %v450 = vpop.f32.mrb[0].mxu0
    %451 = vmatprep.mubr.f32.mxu0 0.0
    %452 = vmatmul.mubr.f32.gmra.mrb[0].mxu0 %v335
    %v453 = vpop.f32.mrb[0].mxu0
    %v454 = vadd.f32 0.0, %v453
    %v455 = vpop.f32.mrb[0].mxu0
    %456 = vmatprep.mubr.f32.mxu0 0.0
    %457 = vmatmul.mubr.f32.gmra.mrb[0].mxu0 %v336
    %v458 = vpop.f32.mrb[0].mxu0
    %v459 = vadd.f32 0.0, %v458
    %v460 = vpop.f32.mrb[0].mxu0
    %461 = vmatprep.mubr.f32.mxu0 0.0
    %462 = vmatmul.mubr.f32.gmra.mrb[0].mxu0 %v337
    %v463 = vpop.f32.mrb[0].mxu0
    %v464 = vadd.f32 0.0, %v463
    %v465 = vpop.f32.mrb[0].mxu0
    %466 = vmatprep.mubr.f32.mxu0 0.0
    %467 = vmatmul.mubr.f32.gmra.mrb[0].mxu0 %v338
    %v468 = vpop.f32.mrb[0].mxu0
    %v469 = vadd.f32 0.0, %v468
    %v470 = vpop.f32.mrb[0].mxu0
    %471 = vmatprep.mubr.f32.mxu0 0.0
    %472 = vmatmul.mubr.f32.gmra.mrb[0].mxu0 %v339
    %v473 = vpop.f32.mrb[0].mxu0
    %v474 = vadd.f32 0.0, %v473
    %v475 = vpop.f32.mrb[0].mxu0
    %476 = vmatprep.mubr.f32.mxu0 0.0
    %477 = vmatmul.mubr.f32.gmra.mrb[0].mxu0 %v340
    %v478 = vpop.f32.mrb[0].mxu0
    %v479 = vadd.f32 0.0, %v478
    %v480 = vpop.f32.mrb[0].mxu0
    %481 = vmatprep.mubr.f32.mxu0 0.0
    %482 = vmatmul.mubr.f32.gmra.mrb[0].mxu0 %v341
    %v483 = vpop.f32.mrb[0].mxu0
    %v484 = vadd.f32 0.0, %v483
    %v485 = vpop.f32.mrb[0].mxu0
    %486 = vmatprep.mubr.f32.mxu0 0.0
    %487 = vmatmul.mubr.f32.gmra.mrb[0].mxu0 %v342
    %v488 = vpop.f32.mrb[0].mxu0
    %v489 = vadd.f32 0.0, %v488
    %v490 = vpop.f32.mrb[0].mxu0
    %491 = vmatprep.mubr.f32.mxu0 0.0
    %492 = vmatmul.mubr.f32.gmra.mrb[0].mxu0 %v343
    %v493 = vpop.f32.mrb[0].mxu0
    %v494 = vadd.f32 0.0, %v493
    %v495 = vpop.f32.mrb[0].mxu0
    %496 = vmatprep.mubr.f32.mxu0 0.0
    %497 = vmatmul.mubr.f32.gmra.mrb[0].mxu0 %v344
    %v498 = vpop.f32.mrb[0].mxu0
    %v499 = vadd.f32 0.0, %v498
    %v500 = vpop.f32.mrb[0].mxu0
    %501 = vmatprep.mubr.f32.mxu0 0.0
    %502 = vmatmul.mubr.f32.gmra.mrb[0].mxu0 %v345
    %v503 = vpop.f32.mrb[0].mxu0
    %v504 = vadd.f32 0.0, %v503
    %v505 = vpop.f32.mrb[0].mxu0
    %506 = vdwg.mxu0
    %507 = vst [vmem:[%s4] sm:$0xff] %v429
    %508 = vst [vmem:[%s4 + $0x8] sm:$0xff] %v434
    %509 = vst [vmem:[%s4 + $0x10] sm:$0xff] %v439
    %510 = vst [vmem:[%s4 + $0x18] sm:$0xff] %v444
    %511 = vst [vmem:[%s4 + $0x20] sm:$0xff] %v449
    %512 = vst [vmem:[%s4 + $0x28] sm:$0xff] %v454
    %513 = vst [vmem:[%s4 + $0x30] sm:$0xff] %v459
    %514 = vst [vmem:[%s4 + $0x38] sm:$0xff] %v464
    %515 = vst [vmem:[%s4 + $0x40] sm:$0xff] %v469
    %516 = vst [vmem:[%s4 + $0x48] sm:$0xff] %v474
    %517 = vst [vmem:[%s4 + $0x50] sm:$0xff] %v479
    %518 = vst [vmem:[%s4 + $0x58] sm:$0xff] %v484
    %519 = vst [vmem:[%s4 + $0x60] sm:$0xff] %v489
    %520 = vst [vmem:[%s4 + $0x68] sm:$0xff] %v494
    %521 = vst [vmem:[%s4 + $0x70] sm:$0xff] %v499
    %522 = vst [vmem:[%s4 + $0x78] sm:$0xff] %v504
  $region29: #{step.3} parent=0 // pred_fallthru
    _
  // Predicated region
  $region30: #{step.3} parent=0 // pred_check
    _
  $region31: #{step.3} parent=0 // pred_check_branch
    %524 = sbr.rel (0) target = $region33
  $region32: #{step.3} parent=0 // pred_region
    _
  $region33: #{step.3} parent=0 // pred_fallthru
    _
  // Predicated region
  $region34: #{step.3} parent=0 // pred_check
    _
  $region35: #{step.3} parent=0 // pred_check_branch
    %526 = sbr.rel (0) target = $region37
  $region36: #{step.3} parent=0 // pred_region
    _
  $region37: #{step.3} parent=0 // pred_fallthru
    _

// kernel: step.5
$region0: #{step.5}
  #allocation0 [shape = 'u32[]', space=smem, size = 0x4, offset = 0x4, fixed_abs, tag = 'smem constant byte address 0x4 - core index']
  #allocation1 [shape = 'u32[144,128]{1,0:T(1,128)}', space=vmem, size = 0x12000, scoped, tag = 'internal scratch']
  #allocation2 [shape = 'f32[128,128]{1,0:T(8,128)}', space=vmem, size = 0x10000, scoped, tag = 'scratch operand']
  %s0 = inlined_call_operand.vmem [shape: s8[128,128], index: 0, kind: input, shape index: {}]
  %s1 = inlined_call_operand.vmem [shape: f32[128,128], index: 1, kind: input, shape index: {}]
  %s2 = inlined_call_operand.vmem [shape: f32[1,128], index: 2, kind: input, shape index: {}]
  %s3 = inlined_call_operand.vmem [shape: f32[128,128], index: 3, kind: output, shape index: {}]
  %s4 = sld [smem:[#allocation0]]
  $region34: #{step.5} parent=0
    _
  %s6 = ssub.s32 1, %s4
  %s7 = scalar_select 0, %s6, %s4
  // Predicated region
  $region2: #{step.5} parent=0 // pred_check
    _
  $region3: #{step.5} parent=0 // pred_check_branch
    %9 = sbr.rel (0) target = $region5
  $region4: #{step.5} parent=0 // pred_region
    _
  $region5: #{step.5} parent=0 // pred_fallthru
    _
  // Predicated region
  $region6: #{step.5} parent=0 // pred_check
    _
  $region7: #{step.5} parent=0 // pred_check_branch
    %11 = sbr.rel (0) target = $region9
  $region8: #{step.5} parent=0 // pred_region
    _
  $region9: #{step.5} parent=0 // pred_fallthru
    _
  // Predicated region
  $region10: #{step.5} parent=0 // pred_check
    _
  $region11: #{step.5} parent=0 // pred_check_branch
    %13 = sbr.rel (0) target = $region13
  $region12: #{step.5} parent=0 // pred_region
    _
  $region13: #{step.5} parent=0 // pred_fallthru
    _
  %v14 = vld [vmem:[%s0] sm:$0xff]
  %v15 = vld [vmem:[%s0 + $0x8] sm:$0xff]
  %v16 = vld [vmem:[%s0 + $0x10] sm:$0xff]
  %v17 = vld [vmem:[%s0 + $0x18] sm:$0xff]
  %v18 = vunpack.c.0.s8 %v14
  %v19 = vunpack.c.1.s8 %v14
  %v20 = vunpack.c.2.s8 %v14
  %v21 = vunpack.c.3.s8 %v14
  %v22 = vunpack.c.0.s8 %v15
  %v23 = vunpack.c.1.s8 %v15
  %v24 = vunpack.c.2.s8 %v15
  %v25 = vunpack.c.3.s8 %v15
  %v26 = vunpack.c.0.s8 %v16
  %v27 = vunpack.c.1.s8 %v16
  %v28 = vunpack.c.2.s8 %v16
  %v29 = vunpack.c.3.s8 %v16
  %v30 = vunpack.c.0.s8 %v17
  %v31 = vunpack.c.1.s8 %v17
  %v32 = vunpack.c.2.s8 %v17
  %v33 = vunpack.c.3.s8 %v17
  %v34 = vcvt.s32.f32 %v18
  %v35 = vcvt.s32.f32 %v19
  %v36 = vcvt.s32.f32 %v20
  %v37 = vcvt.s32.f32 %v21
  %v38 = vcvt.s32.f32 %v22
  %v39 = vcvt.s32.f32 %v23
  %v40 = vcvt.s32.f32 %v24
  %v41 = vcvt.s32.f32 %v25
  %v42 = vcvt.s32.f32 %v26
  %v43 = vcvt.s32.f32 %v27
  %v44 = vcvt.s32.f32 %v28
  %v45 = vcvt.s32.f32 %v29
  %v46 = vcvt.s32.f32 %v30
  %v47 = vcvt.s32.f32 %v31
  %v48 = vcvt.s32.f32 %v32
  %v49 = vcvt.s32.f32 %v33
  %s50 = smul.u32 0, 128
  %s51 = scalar_lea.vmem %s1, %s50
  %v52 = vld [vmem:[%s51] sm:$0xff]
  %v53 = vld [vmem:[%s51 + $0x8] sm:$0xff]
  %v54 = vld [vmem:[%s51 + $0x10] sm:$0xff]
  %v55 = vld [vmem:[%s51 + $0x18] sm:$0xff]
  %v56 = vld [vmem:[%s51 + $0x20] sm:$0xff]
  %v57 = vld [vmem:[%s51 + $0x28] sm:$0xff]
  %v58 = vld [vmem:[%s51 + $0x30] sm:$0xff]
  %v59 = vld [vmem:[%s51 + $0x38] sm:$0xff]
  %v60 = vld [vmem:[%s51 + $0x40] sm:$0xff]
  %v61 = vld [vmem:[%s51 + $0x48] sm:$0xff]
  %v62 = vld [vmem:[%s51 + $0x50] sm:$0xff]
  %v63 = vld [vmem:[%s51 + $0x58] sm:$0xff]
  %v64 = vld [vmem:[%s51 + $0x60] sm:$0xff]
  %v65 = vld [vmem:[%s51 + $0x68] sm:$0xff]
  %v66 = vld [vmem:[%s51 + $0x70] sm:$0xff]
  %v67 = vld [vmem:[%s51 + $0x78] sm:$0xff]
  %68 = vmatprep.subr.mxu0 0.0
  %69 = vmatpush1.msra.mxu0 %v52
  %70 = vmatprep.subr.mxu0 0.0
  %71 = vmatpush1.msra.mxu0 %v53
  %72 = vmatprep.subr.mxu0 0.0
  %73 = vmatpush1.msra.mxu0 %v54
  %74 = vmatprep.subr.mxu0 0.0
  %75 = vmatpush1.msra.mxu0 %v55
  %76 = vmatprep.subr.mxu0 0.0
  %77 = vmatpush1.msra.mxu0 %v56
  %78 = vmatprep.subr.mxu0 0.0
  %79 = vmatpush1.msra.mxu0 %v57
  %80 = vmatprep.subr.mxu0 0.0
  %81 = vmatpush1.msra.mxu0 %v58
  %82 = vmatprep.subr.mxu0 0.0
  %83 = vmatpush1.msra.mxu0 %v59
  %84 = vmatprep.subr.mxu0 0.0
  %85 = vmatpush1.msra.mxu0 %v60
  %86 = vmatprep.subr.mxu0 0.0
  %87 = vmatpush1.msra.mxu0 %v61
  %88 = vmatprep.subr.mxu0 0.0
  %89 = vmatpush1.msra.mxu0 %v62
  %90 = vmatprep.subr.mxu0 0.0
  %91 = vmatpush1.msra.mxu0 %v63
  %92 = vmatprep.subr.mxu0 0.0
  %93 = vmatpush1.msra.mxu0 %v64
  %94 = vmatprep.subr.mxu0 0.0
  %95 = vmatpush1.msra.mxu0 %v65
  %96 = vmatprep.subr.mxu0 0.0
  %97 = vmatpush1.msra.mxu0 %v66
  %98 = vmatprep.subr.mxu0 0.0
  %99 = vmatpush1.msra.mxu0 %v67
  %100 = vmatprep.subr.mxu0 0.0
  %101 = vmatpush1.msra.mxu0 0.0
  %102 = vmatprep.subr.mxu0 0.0
  %103 = vmatpush1.msra.mxu0 0.0
  %104 = vmatprep.subr.mxu0 0.0
  %105 = vmatpush1.msra.mxu0 0.0
  %106 = vmatprep.subr.mxu0 0.0
  %107 = vmatpush1.msra.mxu0 0.0
  %108 = vmatprep.subr.mxu0 0.0
  %109 = vmatpush1.msra.mxu0 0.0
  %110 = vmatprep.subr.mxu0 0.0
  %111 = vmatpush1.msra.mxu0 0.0
  %112 = vmatprep.subr.mxu0 0.0
  %113 = vmatpush1.msra.mxu0 0.0
  %114 = vmatprep.subr.mxu0 0.0
  %115 = vmatpush1.msra.mxu0 0.0
  %116 = vmatprep.subr.mxu0 0.0
  %117 = vmatpush1.msra.mxu0 0.0
  %118 = vmatprep.subr.mxu0 0.0
  %119 = vmatpush1.msra.mxu0 0.0
  %120 = vmatprep.subr.mxu0 0.0
  %121 = vmatpush1.msra.mxu0 0.0
  %122 = vmatprep.subr.mxu0 0.0
  %123 = vmatpush1.msra.mxu0 0.0
  %124 = vmatprep.subr.mxu0 0.0
  %125 = vmatpush1.msra.mxu0 0.0
  %126 = vmatprep.subr.mxu0 0.0
  %127 = vmatpush1.msra.mxu0 0.0
  %128 = vmatprep.subr.mxu0 0.0
  %129 = vmatpush1.msra.mxu0 0.0
  %130 = vmatprep.subr.mxu0 0.0
  %131 = vmatpush1.msra.mxu0 0.0
  %132 = vmatprep.mubr.f32.mxu0 0.0
  %133 = vmatmul.mubr.f32.gmra.mrb[0].mxu0 %v34
  %v134 = vpop.f32.mrb[0].mxu0
  %v135 = vadd.f32 0.0, %v134
  %v136 = vpop.f32.mrb[0].mxu0
  %137 = vmatprep.mubr.f32.mxu0 0.0
  %138 = vmatmul.mubr.f32.gmra.mrb[0].mxu0 %v35
  %v139 = vpop.f32.mrb[0].mxu0
  %v140 = vadd.f32 0.0, %v139
  %v141 = vpop.f32.mrb[0].mxu0
  %142 = vmatprep.mubr.f32.mxu0 0.0
  %143 = vmatmul.mubr.f32.gmra.mrb[0].mxu0 %v36
  %v144 = vpop.f32.mrb[0].mxu0
  %v145 = vadd.f32 0.0, %v144
  %v146 = vpop.f32.mrb[0].mxu0
  %147 = vmatprep.mubr.f32.mxu0 0.0
  %148 = vmatmul.mubr.f32.gmra.mrb[0].mxu0 %v37
  %v149 = vpop.f32.mrb[0].mxu0
  %v150 = vadd.f32 0.0, %v149
  %v151 = vpop.f32.mrb[0].mxu0
  %152 = vmatprep.mubr.f32.mxu0 0.0
  %153 = vmatmul.mubr.f32.gmra.mrb[0].mxu0 %v38
  %v154 = vpop.f32.mrb[0].mxu0
  %v155 = vadd.f32 0.0, %v154
  %v156 = vpop.f32.mrb[0].mxu0
  %157 = vmatprep.mubr.f32.mxu0 0.0
  %158 = vmatmul.mubr.f32.gmra.mrb[0].mxu0 %v39
  %v159 = vpop.f32.mrb[0].mxu0
  %v160 = vadd.f32 0.0, %v159
  %v161 = vpop.f32.mrb[0].mxu0
  %162 = vmatprep.mubr.f32.mxu0 0.0
  %163 = vmatmul.mubr.f32.gmra.mrb[0].mxu0 %v40
  %v164 = vpop.f32.mrb[0].mxu0
  %v165 = vadd.f32 0.0, %v164
  %v166 = vpop.f32.mrb[0].mxu0
  %167 = vmatprep.mubr.f32.mxu0 0.0
  %168 = vmatmul.mubr.f32.gmra.mrb[0].mxu0 %v41
  %v169 = vpop.f32.mrb[0].mxu0
  %v170 = vadd.f32 0.0, %v169
  %v171 = vpop.f32.mrb[0].mxu0
  %172 = vmatprep.mubr.f32.mxu0 0.0
  %173 = vmatmul.mubr.f32.gmra.mrb[0].mxu0 %v42
  %v174 = vpop.f32.mrb[0].mxu0
  %v175 = vadd.f32 0.0, %v174
  %v176 = vpop.f32.mrb[0].mxu0
  %177 = vmatprep.mubr.f32.mxu0 0.0
  %178 = vmatmul.mubr.f32.gmra.mrb[0].mxu0 %v43
  %v179 = vpop.f32.mrb[0].mxu0
  %v180 = vadd.f32 0.0, %v179
  %v181 = vpop.f32.mrb[0].mxu0
  %182 = vmatprep.mubr.f32.mxu0 0.0
  %183 = vmatmul.mubr.f32.gmra.mrb[0].mxu0 %v44
  %v184 = vpop.f32.mrb[0].mxu0
  %v185 = vadd.f32 0.0, %v184
  %v186 = vpop.f32.mrb[0].mxu0
  %187 = vmatprep.mubr.f32.mxu0 0.0
  %188 = vmatmul.mubr.f32.gmra.mrb[0].mxu0 %v45
  %v189 = vpop.f32.mrb[0].mxu0
  %v190 = vadd.f32 0.0, %v189
  %v191 = vpop.f32.mrb[0].mxu0
  %192 = vmatprep.mubr.f32.mxu0 0.0
  %193 = vmatmul.mubr.f32.gmra.mrb[0].mxu0 %v46
  %v194 = vpop.f32.mrb[0].mxu0
  %v195 = vadd.f32 0.0, %v194
  %v196 = vpop.f32.mrb[0].mxu0
  %197 = vmatprep.mubr.f32.mxu0 0.0
  %198 = vmatmul.mubr.f32.gmra.mrb[0].mxu0 %v47
  %v199 = vpop.f32.mrb[0].mxu0
  %v200 = vadd.f32 0.0, %v199
  %v201 = vpop.f32.mrb[0].mxu0
  %202 = vmatprep.mubr.f32.mxu0 0.0
  %203 = vmatmul.mubr.f32.gmra.mrb[0].mxu0 %v48
  %v204 = vpop.f32.mrb[0].mxu0
  %v205 = vadd.f32 0.0, %v204
  %v206 = vpop.f32.mrb[0].mxu0
  %207 = vmatprep.mubr.f32.mxu0 0.0
  %208 = vmatmul.mubr.f32.gmra.mrb[0].mxu0 %v49
  %v209 = vpop.f32.mrb[0].mxu0
  %v210 = vadd.f32 0.0, %v209
  %v211 = vpop.f32.mrb[0].mxu0
  %212 = vdwg.mxu0
  %p213 = scmp.eq.s32.totalorder 0, 0
  // Predicated region
  $region14: #{step.5} parent=0 // pred_check
    %p214 = pneg %p213
  $region15: #{step.5} parent=0 // pred_check_branch
    %216 = sbr.rel (%p214) target = $region17
  $region16: #{step.5} parent=0 // pred_region
    %217 = vst [vmem:[#allocation2] sm:$0xff] %v135
    %218 = vst [vmem:[#allocation2 + $0x8] sm:$0xff] %v140
    %219 = vst [vmem:[#allocation2 + $0x10] sm:$0xff] %v145
    %220 = vst [vmem:[#allocation2 + $0x18] sm:$0xff] %v150
    %221 = vst [vmem:[#allocation2 + $0x20] sm:$0xff] %v155
    %222 = vst [vmem:[#allocation2 + $0x28] sm:$0xff] %v160
    %223 = vst [vmem:[#allocation2 + $0x30] sm:$0xff] %v165
    %224 = vst [vmem:[#allocation2 + $0x38] sm:$0xff] %v170
    %225 = vst [vmem:[#allocation2 + $0x40] sm:$0xff] %v175
    %226 = vst [vmem:[#allocation2 + $0x48] sm:$0xff] %v180
    %227 = vst [vmem:[#allocation2 + $0x50] sm:$0xff] %v185
    %228 = vst [vmem:[#allocation2 + $0x58] sm:$0xff] %v190
    %229 = vst [vmem:[#allocation2 + $0x60] sm:$0xff] %v195
    %230 = vst [vmem:[#allocation2 + $0x68] sm:$0xff] %v200
    %231 = vst [vmem:[#allocation2 + $0x70] sm:$0xff] %v205
    %232 = vst [vmem:[#allocation2 + $0x78] sm:$0xff] %v210
  $region17: #{step.5} parent=0 // pred_fallthru
    _
  %p233 = scmp.gt.s32.totalorder 0, 0
  // Predicated region
  $region18: #{step.5} parent=0 // pred_check
    %p234 = pneg %p233
  $region19: #{step.5} parent=0 // pred_check_branch
    %236 = sbr.rel (%p234) target = $region21
  $region20: #{step.5} parent=0 // pred_region
    %v237 = vld [vmem:[#allocation2] sm:$0xff]
    %v238 = vld [vmem:[#allocation2 + $0x8] sm:$0xff]
    %v239 = vld [vmem:[#allocation2 + $0x10] sm:$0xff]
    %v240 = vld [vmem:[#allocation2 + $0x18] sm:$0xff]
    %v241 = vld [vmem:[#allocation2 + $0x20] sm:$0xff]
    %v242 = vld [vmem:[#allocation2 + $0x28] sm:$0xff]
    %v243 = vld [vmem:[#allocation2 + $0x30] sm:$0xff]
    %v244 = vld [vmem:[#allocation2 + $0x38] sm:$0xff]
    %v245 = vld [vmem:[#allocation2 + $0x40] sm:$0xff]
    %v246 = vld [vmem:[#allocation2 + $0x48] sm:$0xff]
    %v247 = vld [vmem:[#allocation2 + $0x50] sm:$0xff]
    %v248 = vld [vmem:[#allocation2 + $0x58] sm:$0xff]
    %v249 = vld [vmem:[#allocation2 + $0x60] sm:$0xff]
    %v250 = vld [vmem:[#allocation2 + $0x68] sm:$0xff]
    %v251 = vld [vmem:[#allocation2 + $0x70] sm:$0xff]
    %v252 = vld [vmem:[#allocation2 + $0x78] sm:$0xff]
    %v253 = vadd.f32 %v237, %v135
    %v254 = vadd.f32 %v238, %v140
    %v255 = vadd.f32 %v239, %v145
    %v256 = vadd.f32 %v240, %v150
    %v257 = vadd.f32 %v241, %v155
    %v258 = vadd.f32 %v242, %v160
    %v259 = vadd.f32 %v243, %v165
    %v260 = vadd.f32 %v244, %v170
    %v261 = vadd.f32 %v245, %v175
    %v262 = vadd.f32 %v246, %v180
    %v263 = vadd.f32 %v247, %v185
    %v264 = vadd.f32 %v248, %v190
    %v265 = vadd.f32 %v249, %v195
    %v266 = vadd.f32 %v250, %v200
    %v267 = vadd.f32 %v251, %v205
    %v268 = vadd.f32 %v252, %v210
    %269 = vst [vmem:[#allocation2] sm:$0xff] %v253
    %270 = vst [vmem:[#allocation2 + $0x8] sm:$0xff] %v254
    %271 = vst [vmem:[#allocation2 + $0x10] sm:$0xff] %v255
    %272 = vst [vmem:[#allocation2 + $0x18] sm:$0xff] %v256
    %273 = vst [vmem:[#allocation2 + $0x20] sm:$0xff] %v257
    %274 = vst [vmem:[#allocation2 + $0x28] sm:$0xff] %v258
    %275 = vst [vmem:[#allocation2 + $0x30] sm:$0xff] %v259
    %276 = vst [vmem:[#allocation2 + $0x38] sm:$0xff] %v260
    %277 = vst [vmem:[#allocation2 + $0x40] sm:$0xff] %v261
    %278 = vst [vmem:[#allocation2 + $0x48] sm:$0xff] %v262
    %279 = vst [vmem:[#allocation2 + $0x50] sm:$0xff] %v263
    %280 = vst [vmem:[#allocation2 + $0x58] sm:$0xff] %v264
    %281 = vst [vmem:[#allocation2 + $0x60] sm:$0xff] %v265
    %282 = vst [vmem:[#allocation2 + $0x68] sm:$0xff] %v266
    %283 = vst [vmem:[#allocation2 + $0x70] sm:$0xff] %v267
    %284 = vst [vmem:[#allocation2 + $0x78] sm:$0xff] %v268
  $region21: #{step.5} parent=0 // pred_fallthru
    _
  // Predicated region
  $region22: #{step.5} parent=0 // pred_check
    %p285 = pneg %p213
  $region23: #{step.5} parent=0 // pred_check_branch
    %287 = sbr.rel (%p285) target = $region25
  $region24: #{step.5} parent=0 // pred_region
    %v288 = vld [vmem:[#allocation2] sm:$0xff]
    %v289 = vld [vmem:[#allocation2 + $0x8] sm:$0xff]
    %v290 = vld [vmem:[#allocation2 + $0x10] sm:$0xff]
    %v291 = vld [vmem:[#allocation2 + $0x18] sm:$0xff]
    %v292 = vld [vmem:[#allocation2 + $0x20] sm:$0xff]
    %v293 = vld [vmem:[#allocation2 + $0x28] sm:$0xff]
    %v294 = vld [vmem:[#allocation2 + $0x30] sm:$0xff]
    %v295 = vld [vmem:[#allocation2 + $0x38] sm:$0xff]
    %v296 = vld [vmem:[#allocation2 + $0x40] sm:$0xff]
    %v297 = vld [vmem:[#allocation2 + $0x48] sm:$0xff]
    %v298 = vld [vmem:[#allocation2 + $0x50] sm:$0xff]
    %v299 = vld [vmem:[#allocation2 + $0x58] sm:$0xff]
    %v300 = vld [vmem:[#allocation2 + $0x60] sm:$0xff]
    %v301 = vld [vmem:[#allocation2 + $0x68] sm:$0xff]
    %v302 = vld [vmem:[#allocation2 + $0x70] sm:$0xff]
    %v303 = vld [vmem:[#allocation2 + $0x78] sm:$0xff]
    %v304 = vld [vmem:[%s2] sm:$0x1]
    %v306 = vlaneseq
    %v307 = vshrl.u32 %v306, 7
    %v308 = vsub.s32 0, %v307
    %v309 = vrot.slane %v304, %v308
    %v311 = vadd.f32 %v288, %v309
    %v312 = vadd.f32 %v289, %v309
    %v313 = vadd.f32 %v290, %v309
    %v314 = vadd.f32 %v291, %v309
    %v315 = vadd.f32 %v292, %v309
    %v316 = vadd.f32 %v293, %v309
    %v317 = vadd.f32 %v294, %v309
    %v318 = vadd.f32 %v295, %v309
    %v319 = vadd.f32 %v296, %v309
    %v320 = vadd.f32 %v297, %v309
    %v321 = vadd.f32 %v298, %v309
    %v322 = vadd.f32 %v299, %v309
    %v323 = vadd.f32 %v300, %v309
    %v324 = vadd.f32 %v301, %v309
    %v325 = vadd.f32 %v302, %v309
    %v326 = vadd.f32 %v303, %v309
    %v327 = vxor.u32 %v311, 2147483648
    %v328 = vxor.u32 %v312, 2147483648
    %v329 = vxor.u32 %v313, 2147483648
    %v330 = vxor.u32 %v314, 2147483648
    %v331 = vxor.u32 %v315, 2147483648
    %v332 = vxor.u32 %v316, 2147483648
    %v333 = vxor.u32 %v317, 2147483648
    %v334 = vxor.u32 %v318, 2147483648
    %v335 = vxor.u32 %v319, 2147483648
    %v336 = vxor.u32 %v320, 2147483648
    %v337 = vxor.u32 %v321, 2147483648
    %v338 = vxor.u32 %v322, 2147483648
    %v339 = vxor.u32 %v323, 2147483648
    %v340 = vxor.u32 %v324, 2147483648
    %v341 = vxor.u32 %v325, 2147483648
    %v342 = vxor.u32 %v326, 2147483648
    %v343 = vmul.f32 %v327, 1.442695
    %v344 = vpow.pop %v343
    %v345 = vmul.f32 %v328, 1.442695
    %v346 = vpow.pop %v345
    %v347 = vmul.f32 %v329, 1.442695
    %v348 = vpow.pop %v347
    %v349 = vmul.f32 %v330, 1.442695
    %v350 = vpow.pop %v349
    %v351 = vmul.f32 %v331, 1.442695
    %v352 = vpow.pop %v351
    %v353 = vmul.f32 %v332, 1.442695
    %v354 = vpow.pop %v353
    %v355 = vmul.f32 %v333, 1.442695
    %v356 = vpow.pop %v355
    %v357 = vmul.f32 %v334, 1.442695
    %v358 = vpow.pop %v357
    %v359 = vmul.f32 %v335, 1.442695
    %v360 = vpow.pop %v359
    %v361 = vmul.f32 %v336, 1.442695
    %v362 = vpow.pop %v361
    %v363 = vmul.f32 %v337, 1.442695
    %v364 = vpow.pop %v363
    %v365 = vmul.f32 %v338, 1.442695
    %v366 = vpow.pop %v365
    %v367 = vmul.f32 %v339, 1.442695
    %v368 = vpow.pop %v367
    %v369 = vmul.f32 %v340, 1.442695
    %v370 = vpow.pop %v369
    %v371 = vmul.f32 %v341, 1.442695
    %v372 = vpow.pop %v371
    %v373 = vmul.f32 %v342, 1.442695
    %v374 = vpow.pop %v373
    %v375 = vadd.f32 %v344, 1.0
    %v376 = vadd.f32 %v346, 1.0
    %v377 = vadd.f32 %v348, 1.0
    %v378 = vadd.f32 %v350, 1.0
    %v379 = vadd.f32 %v352, 1.0
    %v380 = vadd.f32 %v354, 1.0
    %v381 = vadd.f32 %v356, 1.0
    %v382 = vadd.f32 %v358, 1.0
    %v383 = vadd.f32 %v360, 1.0
    %v384 = vadd.f32 %v362, 1.0
    %v385 = vadd.f32 %v364, 1.0
    %v386 = vadd.f32 %v366, 1.0
    %v387 = vadd.f32 %v368, 1.0
    %v388 = vadd.f32 %v370, 1.0
    %v389 = vadd.f32 %v372, 1.0
    %v390 = vadd.f32 %v374, 1.0
    %v391 = vrcp.pop %v375
    %v392 = vmul.f32 1.0, %v391
    %v393 = vrcp.pop %v376
    %v394 = vmul.f32 1.0, %v393
    %v395 = vrcp.pop %v377
    %v396 = vmul.f32 1.0, %v395
    %v397 = vrcp.pop %v378
    %v398 = vmul.f32 1.0, %v397
    %v399 = vrcp.pop %v379
    %v400 = vmul.f32 1.0, %v399
    %v401 = vrcp.pop %v380
    %v402 = vmul.f32 1.0, %v401
    %v403 = vrcp.pop %v381
    %v404 = vmul.f32 1.0, %v403
    %v405 = vrcp.pop %v382
    %v406 = vmul.f32 1.0, %v405
    %v407 = vrcp.pop %v383
    %v408 = vmul.f32 1.0, %v407
    %v409 = vrcp.pop %v384
    %v410 = vmul.f32 1.0, %v409
    %v411 = vrcp.pop %v385
    %v412 = vmul.f32 1.0, %v411
    %v413 = vrcp.pop %v386
    %v414 = vmul.f32 1.0, %v413
    %v415 = vrcp.pop %v387
    %v416 = vmul.f32 1.0, %v415
    %v417 = vrcp.pop %v388
    %v418 = vmul.f32 1.0, %v417
    %v419 = vrcp.pop %v389
    %v420 = vmul.f32 1.0, %v419
    %v421 = vrcp.pop %v390
    %v422 = vmul.f32 1.0, %v421
    %423 = vst [vmem:[%s3] sm:$0xff] %v392
    %424 = vst [vmem:[%s3 + $0x8] sm:$0xff] %v394
    %425 = vst [vmem:[%s3 + $0x10] sm:$0xff] %v396
    %426 = vst [vmem:[%s3 + $0x18] sm:$0xff] %v398
    %427 = vst [vmem:[%s3 + $0x20] sm:$0xff] %v400
    %428 = vst [vmem:[%s3 + $0x28] sm:$0xff] %v402
    %429 = vst [vmem:[%s3 + $0x30] sm:$0xff] %v404
    %430 = vst [vmem:[%s3 + $0x38] sm:$0xff] %v406
    %431 = vst [vmem:[%s3 + $0x40] sm:$0xff] %v408
    %432 = vst [vmem:[%s3 + $0x48] sm:$0xff] %v410
    %433 = vst [vmem:[%s3 + $0x50] sm:$0xff] %v412
    %434 = vst [vmem:[%s3 + $0x58] sm:$0xff] %v414
    %435 = vst [vmem:[%s3 + $0x60] sm:$0xff] %v416
    %436 = vst [vmem:[%s3 + $0x68] sm:$0xff] %v418
    %437 = vst [vmem:[%s3 + $0x70] sm:$0xff] %v420
    %438 = vst [vmem:[%s3 + $0x78] sm:$0xff] %v422
  $region25: #{step.5} parent=0 // pred_fallthru
    _
  // Predicated region
  $region26: #{step.5} parent=0 // pred_check
    _
  $region27: #{step.5} parent=0 // pred_check_branch
    %440 = sbr.rel (0) target = $region29
  $region28: #{step.5} parent=0 // pred_region
    _
  $region29: #{step.5} parent=0 // pred_fallthru
    _
  // Predicated region
  $region30: #{step.5} parent=0 // pred_check
    _
  $region31: #{step.5} parent=0 // pred_check_branch
    %442 = sbr.rel (0) target = $region33
  $region32: #{step.5} parent=0 // pred_region
    _
  $region33: #{step.5} parent=0 // pred_fallthru
    _

</llo_original>
